<compile_context>
chip_gen: v7x
topology: tpu7x:2x2x1
jax: 0.10.0
libtpu: 0.0.40
codegen_flags: <defaults>
</compile_context>

<pallas_src>
import functools

import jax
import jax.numpy as jnp
from jax.experimental import pallas as pl
from jax.experimental.pallas import tpu as pltpu


def _round_up(x, m):
    return (x + m - 1) // m * m


# ---------------------------------------------------------------------------
# Fused CNN_Text feature kernel.
#   x_ref : (block_n, W_pad, D)   zero-padded embeddings, W_pad = W_eff + K_max - 1
#   w_ref : (K_max, D, Co_pad)    all conv branches packed along Co (zero padded)
#   b_ref : (1, Co_pad)           packed biases
#   m_ref : (W_eff, Co_pad)       mask[t, c] = 1 iff t < W - K(c) + 1
#   o_ref : (block_n, Co_pad)     tanh( sum_t mask * tanh(conv) )
# conv is computed as an accumulation of K_max shifted matmuls (the unfold lives here).
# ---------------------------------------------------------------------------
def _cnn_text_kernel(x_ref, w_ref, b_ref, m_ref, o_ref, *, block_n, w_eff, k_max,
                     compute_dtype):
    d = x_ref.shape[-1]
    co_pad = o_ref.shape[-1]

    acc = jnp.zeros((block_n * w_eff, co_pad), jnp.float32)
    for k in range(k_max):                                  # static, unrolled
        xk = x_ref[:, pl.ds(k, w_eff), :]                   # (block_n, w_eff, d)
        xk = xk.reshape(block_n * w_eff, d).astype(compute_dtype)
        wk = w_ref[k].astype(compute_dtype)                 # (d, co_pad)
        acc = acc + jnp.dot(xk, wk, preferred_element_type=jnp.float32)

    a = jnp.tanh(acc + b_ref[...])                          # tanh(conv), f32 on EUP
    a = a.reshape(block_n, w_eff, co_pad)
    pooled = jnp.sum(a * m_ref[...][None, :, :], axis=1)    # == T * avg_pool1d
    o_ref[...] = jnp.tanh(pooled)


def _cnn_text_features(emb_pad, w_packed, b_packed, mask, *, block_n, w_eff, k_max,
                       compute_dtype):
    n_pad, w_pad, d = emb_pad.shape
    co_pad = w_packed.shape[-1]
    kernel = functools.partial(_cnn_text_kernel, block_n=block_n, w_eff=w_eff,
                               k_max=k_max, compute_dtype=compute_dtype)
    return pl.pallas_call(
        kernel,
        out_shape=jax.ShapeDtypeStruct((n_pad, co_pad), jnp.float32),
        grid=(n_pad // block_n,),
        in_specs=[
            pl.BlockSpec((block_n, w_pad, d), lambda n: (n, 0, 0)),
            pl.BlockSpec((k_max, d, co_pad), lambda n: (0, 0, 0)),
            pl.BlockSpec((1, co_pad), lambda n: (0, 0)),
            pl.BlockSpec((w_eff, co_pad), lambda n: (0, 0)),
        ],
        out_specs=pl.BlockSpec((block_n, co_pad), lambda n: (n, 0)),
        compiler_params=pltpu.CompilerParams(
            dimension_semantics=("parallel",),          # both v7x TCs take N-blocks
            vmem_limit_bytes=32 * 1024 * 1024),         # safe on v5e/v6e/v7x
    )(emb_pad, w_packed, b_packed, mask)


# ---------------------------------------------------------------------------
# Cosine similarity kernel (PyTorch F.cosine_similarity, dim=1, eps=1e-8).
# Pad channels of the feature vectors are exactly zero, so norms are unaffected.
# ---------------------------------------------------------------------------
def _cosine_kernel(a_ref, b_ref, o_ref):
    a = a_ref[...]
    b = b_ref[...]
    dot = jnp.sum(a * b, axis=-1, keepdims=True)
    na = jnp.maximum(jnp.sqrt(jnp.sum(a * a, axis=-1, keepdims=True)), 1e-8)
    nb = jnp.maximum(jnp.sqrt(jnp.sum(b * b, axis=-1, keepdims=True)), 1e-8)
    o_ref[...] = dot / (na * nb)


def _cosine_similarity(a, b):
    n, c = a.shape
    out = pl.pallas_call(
        _cosine_kernel,
        out_shape=jax.ShapeDtypeStruct((n, 1), jnp.float32),
        grid=(1,),
        in_specs=[pl.BlockSpec((n, c), lambda i: (0, 0)),
                  pl.BlockSpec((n, c), lambda i: (0, 0))],
        out_specs=pl.BlockSpec((n, 1), lambda i: (0, 0)),
    )(a, b)
    return out[:, 0]


# ---------------------------------------------------------------------------
# CNN_Sim.forward(q1, q2)
# ---------------------------------------------------------------------------
def cnn_sim_forward(q1_ids, q2_ids, embed_w, conv_ws, conv_bs, Ks, *,
                    block_n=256, compute_dtype=jnp.float32, return_features=False):
    """cosine_similarity(CNN_Text(q1), CNN_Text(q2)) with cnn1's weights for both."""
    n, w = q1_ids.shape
    d = embed_w.shape[1]
    co = conv_ws[0].shape[0]
    k_max = max(Ks)
    co_total = co * len(Ks)
    co_pad = _round_up(co_total, 128)          # lane-dense output
    w_eff = _round_up(w, 8)                    # sublane-friendly conv-position count
    w_pad = w_eff + k_max - 1                  # room for the K-1 shifted windows

    # Pack the conv branches along the padded Co axis (weights, biases, valid-t mask).
    w_packed = jnp.zeros((k_max, d, co_pad), jnp.float32)
    b_packed = jnp.zeros((1, co_pad), jnp.float32)
    t_limit = jnp.zeros((co_pad,), jnp.int32)
    for i, (ksz, cw, cb) in enumerate(zip(Ks, conv_ws, conv_bs)):
        wk = jnp.transpose(cw[:, 0, :, :], (1, 2, 0))        # (K, D, Co)
        w_packed = w_packed.at[:ksz, :, i * co:(i + 1) * co].set(wk)
        b_packed = b_packed.at[0, i * co:(i + 1) * co].set(cb)
        t_limit = t_limit.at[i * co:(i + 1) * co].set(w - ksz + 1)
    mask = (jnp.arange(w_eff)[:, None] < t_limit[None, :]).astype(jnp.float32)

    # Embedding lookup (plain JAX gather, glue). q1 and q2 share cnn1's weights, so
    # stack them into one batch and run the fused conv kernel exactly once.
    ids = jnp.concatenate([q1_ids, q2_ids], axis=0)          # (2N, W)
    emb = embed_w[ids].astype(jnp.float32)                   # (2N, W, D)
    n2 = 2 * n

    bn = max(8, (min(block_n, _round_up(n2, 8)) // 8) * 8)   # multiple of 8
    n_blocks = max(2, -(-n2 // bn))                          # >=2 parallel grid steps
    n_pad = n_blocks * bn

    emb_pad = jnp.zeros((n_pad, w_pad, d), jnp.float32)
    emb_pad = emb_pad.at[:n2, :w, :].set(emb)

    feats = _cnn_text_features(emb_pad, w_packed, b_packed, mask,
                               block_n=bn, w_eff=w_eff, k_max=k_max,
                               compute_dtype=compute_dtype)  # (n_pad, co_pad)
    q1f = feats[:n]
    q2f = feats[n:n2]
    cos = _cosine_similarity(q1f, q2f)                       # (N,)
    if return_features:
        return cos, q1f[:, :co_total], q2f[:, :co_total]
    return cos


if __name__ == "__main__":
    key = jax.random.PRNGKey(0)
    V, D = 50, 32            # embed_num, embed_dim
    Co = 16                  # kernel_num
    Ks = (3, 4, 5)           # kernel_sizes
    N, W = 2, 16             # batch, sequence length

    k0, k1, k2, k3, k4 = jax.random.split(key, 5)
    embed_w = jax.random.normal(k0, (V, D), jnp.float32) * 0.1
    conv_ws, conv_bs = [], []
    for i, K in enumerate(Ks):
        conv_ws.append(jax.random.normal(jax.random.fold_in(k1, i),
                                         (Co, 1, K, D), jnp.float32) * 0.05)
        conv_bs.append(jax.random.normal(jax.random.fold_in(k2, i),
                                         (Co,), jnp.float32) * 0.01)
    q1_ids = jax.random.randint(k3, (N, W), 0, V)
    q2_ids = jax.random.randint(k4, (N, W), 0, V)

    cos, q1f, q2f = cnn_sim_forward(q1_ids, q2_ids, embed_w, conv_ws, conv_bs, Ks,
                                    return_features=True)
    cos = jax.block_until_ready(cos)

    # ---- pure-JAX reference (CNN_Text on both inputs with cnn1 weights + cosine) ----
    def ref_cnn_text(ids):
        emb = embed_w[ids]
        outs = []
        for K, cw, cb in zip(Ks, conv_ws, conv_bs):
            T = W - K + 1
            win = jnp.stack([emb[:, k:k + K + T - K, :][:, k:] if False else
                             emb[:, k:k + T, :] for k in range(K)], axis=2)
            win = win.reshape(N, T, K * D)
            conv = jnp.einsum('ntf,cf->ntc', win, cw.reshape(Co, K * D)) + cb
            outs.append(jnp.tanh(jnp.sum(jnp.tanh(conv), axis=1)))
        return jnp.concatenate(outs, axis=1)

    r1 = ref_cnn_text(q1_ids)
    r2 = ref_cnn_text(q2_ids)
    nrm1 = jnp.maximum(jnp.sqrt(jnp.sum(r1 * r1, axis=1)), 1e-8)
    nrm2 = jnp.maximum(jnp.sqrt(jnp.sum(r2 * r2, axis=1)), 1e-8)
    ref_cos = jnp.sum(r1 * r2, axis=1) / (nrm1 * nrm2)

    assert cos.shape == (N,)
    assert q1f.shape == (N, Co * len(Ks))
    assert jnp.allclose(q1f, r1, atol=1e-5, rtol=1e-5)
    assert jnp.allclose(q2f, r2, atol=1e-5, rtol=1e-5)
    assert jnp.allclose(cos, ref_cos, atol=1e-5, rtol=1e-5)
    print("KERNEL_OK")
</pallas_src>

<mosaic_0001>
module attributes {stable_mosaic.version = 11 : i64} {
  func.func @_cnn_text_kernel(%arg0: i32, %arg1: memref<8x20x32xf32, #tpu.memory_space<vmem>>, %arg2: memref<5x32x128xf32, #tpu.memory_space<vmem>>, %arg3: memref<1x128xf32, #tpu.memory_space<vmem>>, %arg4: memref<16x128xf32, #tpu.memory_space<vmem>>, %arg5: memref<8x128xf32, #tpu.memory_space<vmem>>) attributes {dimension_semantics = [#tpu.dimension_semantics<parallel>], iteration_bounds = array<i64: 2>, scalar_prefetch = 0 : i64, scratch_operands = 0 : i64, tpu.core_type = #tpu.core_type<tc>, window_params = [{transform_indices = @transform_0, window_bounds = array<i64: 8, 20, 32>}, {pipeline_mode = #tpu.pipeline_mode<synchronous>, transform_indices = @transform_1, window_bounds = array<i64: 5, 32, 128>}, {pipeline_mode = #tpu.pipeline_mode<synchronous>, transform_indices = @transform_2, window_bounds = array<i64: 1, 128>}, {pipeline_mode = #tpu.pipeline_mode<synchronous>, transform_indices = @transform_3, window_bounds = array<i64: 16, 128>}, {transform_indices = @transform_4, window_bounds = array<i64: 8, 128>}]} {
    %cst = arith.constant 0.000000e+00 : f32
    %0 = vector.broadcast %cst : f32 to vector<128x128xf32>
    %c0 = arith.constant 0 : index
    %c0_0 = arith.constant 0 : index
    %c0_1 = arith.constant 0 : index
    %1 = vector.load %arg1[%c0, %c0_0, %c0_1] : memref<8x20x32xf32, #tpu.memory_space<vmem>>, vector<8x16x32xf32>
    %2 = vector.shape_cast %1 : vector<8x16x32xf32> to vector<128x32xf32>
    %c0_2 = arith.constant 0 : index
    %c0_3 = arith.constant 0 : index
    %c0_4 = arith.constant 0 : index
    %3 = vector.load %arg2[%c0_2, %c0_3, %c0_4] : memref<5x32x128xf32, #tpu.memory_space<vmem>>, vector<1x32x128xf32>
    %4 = vector.shape_cast %3 : vector<1x32x128xf32> to vector<32x128xf32>
    %cst_5 = arith.constant dense<0.000000e+00> : vector<128x128xf32>
    %5 = tpu.matmul %2, %4, %cst_5 {dimension_numbers = #tpu.dot_dimension_numbers<[1], [0], [0], [1], [0, 0, 1, 1], [], []>} : vector<128x32xf32>, vector<32x128xf32>, vector<128x128xf32> -> vector<128x128xf32>
    %6 = arith.addf %0, %5 : vector<128x128xf32>
    %c0_6 = arith.constant 0 : index
    %c1 = arith.constant 1 : index
    %c0_7 = arith.constant 0 : index
    %7 = vector.load %arg1[%c0_6, %c1, %c0_7] : memref<8x20x32xf32, #tpu.memory_space<vmem>>, vector<8x16x32xf32>
    %8 = vector.shape_cast %7 : vector<8x16x32xf32> to vector<128x32xf32>
    %c1_8 = arith.constant 1 : index
    %c0_9 = arith.constant 0 : index
    %c0_10 = arith.constant 0 : index
    %9 = vector.load %arg2[%c1_8, %c0_9, %c0_10] : memref<5x32x128xf32, #tpu.memory_space<vmem>>, vector<1x32x128xf32>
    %10 = vector.shape_cast %9 : vector<1x32x128xf32> to vector<32x128xf32>
    %cst_11 = arith.constant dense<0.000000e+00> : vector<128x128xf32>
    %11 = tpu.matmul %8, %10, %cst_11 {dimension_numbers = #tpu.dot_dimension_numbers<[1], [0], [0], [1], [0, 0, 1, 1], [], []>} : vector<128x32xf32>, vector<32x128xf32>, vector<128x128xf32> -> vector<128x128xf32>
    %12 = arith.addf %6, %11 : vector<128x128xf32>
    %c0_12 = arith.constant 0 : index
    %c2 = arith.constant 2 : index
    %c0_13 = arith.constant 0 : index
    %13 = vector.load %arg1[%c0_12, %c2, %c0_13] : memref<8x20x32xf32, #tpu.memory_space<vmem>>, vector<8x16x32xf32>
    %14 = vector.shape_cast %13 : vector<8x16x32xf32> to vector<128x32xf32>
    %c2_14 = arith.constant 2 : index
    %c0_15 = arith.constant 0 : index
    %c0_16 = arith.constant 0 : index
    %15 = vector.load %arg2[%c2_14, %c0_15, %c0_16] : memref<5x32x128xf32, #tpu.memory_space<vmem>>, vector<1x32x128xf32>
    %16 = vector.shape_cast %15 : vector<1x32x128xf32> to vector<32x128xf32>
    %cst_17 = arith.constant dense<0.000000e+00> : vector<128x128xf32>
    %17 = tpu.matmul %14, %16, %cst_17 {dimension_numbers = #tpu.dot_dimension_numbers<[1], [0], [0], [1], [0, 0, 1, 1], [], []>} : vector<128x32xf32>, vector<32x128xf32>, vector<128x128xf32> -> vector<128x128xf32>
    %18 = arith.addf %12, %17 : vector<128x128xf32>
    %c0_18 = arith.constant 0 : index
    %c3 = arith.constant 3 : index
    %c0_19 = arith.constant 0 : index
    %19 = vector.load %arg1[%c0_18, %c3, %c0_19] : memref<8x20x32xf32, #tpu.memory_space<vmem>>, vector<8x16x32xf32>
    %20 = vector.shape_cast %19 : vector<8x16x32xf32> to vector<128x32xf32>
    %c3_20 = arith.constant 3 : index
    %c0_21 = arith.constant 0 : index
    %c0_22 = arith.constant 0 : index
    %21 = vector.load %arg2[%c3_20, %c0_21, %c0_22] : memref<5x32x128xf32, #tpu.memory_space<vmem>>, vector<1x32x128xf32>
    %22 = vector.shape_cast %21 : vector<1x32x128xf32> to vector<32x128xf32>
    %cst_23 = arith.constant dense<0.000000e+00> : vector<128x128xf32>
    %23 = tpu.matmul %20, %22, %cst_23 {dimension_numbers = #tpu.dot_dimension_numbers<[1], [0], [0], [1], [0, 0, 1, 1], [], []>} : vector<128x32xf32>, vector<32x128xf32>, vector<128x128xf32> -> vector<128x128xf32>
    %24 = arith.addf %18, %23 : vector<128x128xf32>
    %c0_24 = arith.constant 0 : index
    %c4 = arith.constant 4 : index
    %c0_25 = arith.constant 0 : index
    %25 = vector.load %arg1[%c0_24, %c4, %c0_25] : memref<8x20x32xf32, #tpu.memory_space<vmem>>, vector<8x16x32xf32>
    %26 = vector.shape_cast %25 : vector<8x16x32xf32> to vector<128x32xf32>
    %c4_26 = arith.constant 4 : index
    %c0_27 = arith.constant 0 : index
    %c0_28 = arith.constant 0 : index
    %27 = vector.load %arg2[%c4_26, %c0_27, %c0_28] : memref<5x32x128xf32, #tpu.memory_space<vmem>>, vector<1x32x128xf32>
    %28 = vector.shape_cast %27 : vector<1x32x128xf32> to vector<32x128xf32>
    %cst_29 = arith.constant dense<0.000000e+00> : vector<128x128xf32>
    %29 = tpu.matmul %26, %28, %cst_29 {dimension_numbers = #tpu.dot_dimension_numbers<[1], [0], [0], [1], [0, 0, 1, 1], [], []>} : vector<128x32xf32>, vector<32x128xf32>, vector<128x128xf32> -> vector<128x128xf32>
    %30 = arith.addf %24, %29 : vector<128x128xf32>
    %c0_30 = arith.constant 0 : index
    %c0_31 = arith.constant 0 : index
    %31 = vector.load %arg3[%c0_30, %c0_31] : memref<1x128xf32, #tpu.memory_space<vmem>>, vector<1x128xf32>
    %32 = vector.broadcast %31 : vector<1x128xf32> to vector<128x128xf32>
    %33 = arith.addf %30, %32 : vector<128x128xf32>
    %34 = math.tanh %33 : vector<128x128xf32>
    %35 = vector.shape_cast %34 : vector<128x128xf32> to vector<8x16x128xf32>
    %c0_32 = arith.constant 0 : index
    %c0_33 = arith.constant 0 : index
    %36 = vector.load %arg4[%c0_32, %c0_33] : memref<16x128xf32, #tpu.memory_space<vmem>>, vector<16x128xf32>
    %37 = vector.shape_cast %36 : vector<16x128xf32> to vector<1x16x128xf32>
    %38 = vector.broadcast %37 : vector<1x16x128xf32> to vector<8x16x128xf32>
    %39 = arith.mulf %35, %38 : vector<8x16x128xf32>
    %cst_34 = arith.constant dense<0.000000e+00> : vector<8x128xf32>
    %40 = vector.multi_reduction <add>, %39, %cst_34 [1] : vector<8x16x128xf32> to vector<8x128xf32>
    %41 = math.tanh %40 : vector<8x128xf32>
    %c0_35 = arith.constant 0 : index
    %c0_36 = arith.constant 0 : index
    %42 = vector.load %arg5[%c0_35, %c0_36] : memref<8x128xf32, #tpu.memory_space<vmem>>, vector<8x128xf32>
    tpu.vector_store %arg5[%c0_35, %c0_36], %41 {strides = array<i32>} : memref<8x128xf32, #tpu.memory_space<vmem>>, vector<8x128xf32>,
    return
  }
  func.func @transform_0(%arg0: i32) -> (i32, i32, i32) {
    %c0_i32 = arith.constant 0 : i32
    %c0_i32_0 = arith.constant 0 : i32
    %c0_i32_1 = arith.constant 0 : i32
    return %arg0, %c0_i32, %c0_i32_0 : i32, i32, i32
  }
  func.func @transform_1(%arg0: i32) -> (i32, i32, i32) {
    %c0_i32 = arith.constant 0 : i32
    %c0_i32_0 = arith.constant 0 : i32
    %c0_i32_1 = arith.constant 0 : i32
    %c0_i32_2 = arith.constant 0 : i32
    return %c0_i32, %c0_i32_0, %c0_i32_1 : i32, i32, i32
  }
  func.func @transform_2(%arg0: i32) -> (i32, i32) {
    %c0_i32 = arith.constant 0 : i32
    %c0_i32_0 = arith.constant 0 : i32
    %c0_i32_1 = arith.constant 0 : i32
    return %c0_i32, %c0_i32_0 : i32, i32
  }
  func.func @transform_3(%arg0: i32) -> (i32, i32) {
    %c0_i32 = arith.constant 0 : i32
    %c0_i32_0 = arith.constant 0 : i32
    %c0_i32_1 = arith.constant 0 : i32
    return %c0_i32, %c0_i32_0 : i32, i32
  }
  func.func @transform_4(%arg0: i32) -> (i32, i32) {
    %c0_i32 = arith.constant 0 : i32
    %c0_i32_0 = arith.constant 0 : i32
    return %arg0, %c0_i32 : i32, i32
  }
}

</mosaic_0001>

<llo_original>
// kernel: tpu_custom_call.1
$region0: #{tpu_custom_call.1}
  #allocation0 [shape = 'u32[]', space=smem, size = 0x4, offset = 0x4, fixed_abs, tag = 'smem constant byte address 0x4 - core index']
  #allocation1 [shape = 'u32[144,128]{1,0:T(1,128)}', space=vmem, size = 0x12000, scoped, tag = 'internal scratch']
  %s0 = inlined_call_operand.vmem [shape: f32[16,20,32], index: 0, kind: input, shape index: {}]
  %s1 = inlined_call_operand.vmem [shape: f32[5,32,128], index: 1, kind: input, shape index: {}]
  %s2 = inlined_call_operand.vmem [shape: f32[1,128], index: 2, kind: input, shape index: {}]
  %s3 = inlined_call_operand.vmem [shape: f32[16,128], index: 3, kind: input, shape index: {}]
  %s4 = inlined_call_operand.hbm [shape: f32[16,128], index: 4, kind: output, shape index: {}]
  %s5 = sld [smem:[#allocation0]]
  $region49: #{tpu_custom_call.1} parent=0
    _
  %s7 = ssub.s32 1, %s5
  %s8 = scalar_select 0, %s7, %s5
  $region1: #{tpu_custom_call.1} parent=0
    #allocation2 [shape = 'u8[8192]{0}', space=vmem, size = 0x2000, scoped, tag = 'output window, operand 0']
    #allocation3 [shape = 's32[2]{0}', space=sflag, size = 0x8, scoped, tag = 'scoped memory for tpu_custom_call.1']
    %9 = vsyncpa [#allocation3], 0
    %s10 = scalar_lea.sflag [#allocation3], 1
    %11 = vsyncpa %s10, 0
    loop: start=0, step=1, limit=4
    $region2: #{tpu_custom_call.1} parent=1 // loop_pre_header
      _
    $region3: #{tpu_custom_call.1} parent=1 // loop_header
      %s13 = sphi 0, %s17
      %p14 = scmp.ge.s32.totalorder %s13, 4
      %s23 = sphi 0, %s25
      %s26 = sphi 0, %s23
      %s27 = sphi 0, %s26
      %s43 = sphi 0, %s27
      %s47 = sphi 0, %s47
      %s49 = sphi 0, %s47
      %s50 = sphi 0, %s49
      %s64 = sphi 0, %s50
      %s68 = sphi 0, %s68
      %s70 = sphi 0, %s68
      %s71 = sphi 0, %s70
      %s85 = sphi 0, %s71
      %s89 = sphi 0, %s89
      %s91 = sphi 0, %s89
      %s92 = sphi 0, %s91
      %s106 = sphi 0, %s92
      %s112 = sphi 0, %s114
      %s115 = sphi 0, %s112
      %s116 = sphi 0, %s115
      %s132 = sphi 0, %s116
    $region4: #{tpu_custom_call.1} parent=1 // loop_header_branch
      %16 = sbr.rel (%p14) target = $region8
    $region5: #{tpu_custom_call.1} parent=1 // loop_body
      %s18 = ssub.s32 %s13, 1
      %s19 = ssub.s32 %s13, 2
      %s20 = sadd.s32 %s13, 1
      %s21 = ssub.s32 %s13, %s20
      %p22 = scmp.eq.s32.totalorder %s21, 0
      %s24 = sadd.s32 %s23, 1
      %s25 = scalar_select %p22, %s23, %s24
      %p28 = pneg %p22
      %p29 = scmp.eq.s32.totalorder %s13, 1
      %p30 = por %p28, %p29
      %p31 = scmp.ne.s32.totalorder %s23, %s26
      %p32 = scmp.eq.s32.totalorder %s13, 0
      %p33 = por %p31, %p32
      %p34 = scmp.ne.s32.totalorder %s23, %s26
      %p35 = scmp.eq.s32.totalorder %s18, 1
      %p36 = por %p34, %p35
      %p37 = scmp.ne.s32.totalorder %s26, %s27
      %p38 = scmp.eq.s32.totalorder %s18, 0
      %p39 = por %p37, %p38
      %p40 = scmp.ne.s32.totalorder %s26, %s27
      %p41 = scmp.eq.s32.totalorder %s19, 1
      %p42 = por %p40, %p41
      %p44 = scmp.ne.s32.totalorder %s27, %s43
      %p45 = scmp.eq.s32.totalorder %s19, 0
      %p46 = por %p44, %p45
      %s48 = sadd.s32 %s47, 1
      %p51 = scmp.eq.s32.totalorder %s13, 1
      %p52 = scmp.ne.s32.totalorder %s47, %s49
      %p53 = scmp.eq.s32.totalorder %s13, 0
      %p54 = por %p52, %p53
      %p55 = scmp.ne.s32.totalorder %s47, %s49
      %p56 = scmp.eq.s32.totalorder %s18, 1
      %p57 = por %p55, %p56
      %p58 = scmp.ne.s32.totalorder %s49, %s50
      %p59 = scmp.eq.s32.totalorder %s18, 0
      %p60 = por %p58, %p59
      %p61 = scmp.ne.s32.totalorder %s49, %s50
      %p62 = scmp.eq.s32.totalorder %s19, 1
      %p63 = por %p61, %p62
      %p65 = scmp.ne.s32.totalorder %s50, %s64
      %p66 = scmp.eq.s32.totalorder %s19, 0
      %p67 = por %p65, %p66
      %s69 = sadd.s32 %s68, 1
      %p72 = scmp.eq.s32.totalorder %s13, 1
      %p73 = scmp.ne.s32.totalorder %s68, %s70
      %p74 = scmp.eq.s32.totalorder %s13, 0
      %p75 = por %p73, %p74
      %p76 = scmp.ne.s32.totalorder %s68, %s70
      %p77 = scmp.eq.s32.totalorder %s18, 1
      %p78 = por %p76, %p77
      %p79 = scmp.ne.s32.totalorder %s70, %s71
      %p80 = scmp.eq.s32.totalorder %s18, 0
      %p81 = por %p79, %p80
      %p82 = scmp.ne.s32.totalorder %s70, %s71
      %p83 = scmp.eq.s32.totalorder %s19, 1
      %p84 = por %p82, %p83
      %p86 = scmp.ne.s32.totalorder %s71, %s85
      %p87 = scmp.eq.s32.totalorder %s19, 0
      %p88 = por %p86, %p87
      %s90 = sadd.s32 %s89, 1
      %p93 = scmp.eq.s32.totalorder %s13, 1
      %p94 = scmp.ne.s32.totalorder %s89, %s91
      %p95 = scmp.eq.s32.totalorder %s13, 0
      %p96 = por %p94, %p95
      %p97 = scmp.ne.s32.totalorder %s89, %s91
      %p98 = scmp.eq.s32.totalorder %s18, 1
      %p99 = por %p97, %p98
      %p100 = scmp.ne.s32.totalorder %s91, %s92
      %p101 = scmp.eq.s32.totalorder %s18, 0
      %p102 = por %p100, %p101
      %p103 = scmp.ne.s32.totalorder %s91, %s92
      %p104 = scmp.eq.s32.totalorder %s19, 1
      %p105 = por %p103, %p104
      %p107 = scmp.ne.s32.totalorder %s92, %s106
      %p108 = scmp.eq.s32.totalorder %s19, 0
      %p109 = por %p107, %p108
      %s110 = ssub.s32 %s13, %s20
      %p111 = scmp.eq.s32.totalorder %s110, 0
      %s113 = sadd.s32 %s112, 1
      %s114 = scalar_select %p111, %s112, %s113
      %p117 = pneg %p111
      %p118 = scmp.eq.s32.totalorder %s13, 1
      %p119 = por %p117, %p118
      %p120 = scmp.ne.s32.totalorder %s112, %s115
      %p121 = scmp.eq.s32.totalorder %s13, 0
      %p122 = por %p120, %p121
      %p123 = scmp.ne.s32.totalorder %s112, %s115
      %p124 = scmp.eq.s32.totalorder %s18, 1
      %p125 = por %p123, %p124
      %p126 = scmp.ne.s32.totalorder %s115, %s116
      %p127 = scmp.eq.s32.totalorder %s18, 0
      %p128 = por %p126, %p127
      %p129 = scmp.ne.s32.totalorder %s115, %s116
      %p130 = scmp.eq.s32.totalorder %s19, 1
      %p131 = por %p129, %p130
      %p133 = scmp.ne.s32.totalorder %s116, %s132
      %p134 = scmp.eq.s32.totalorder %s19, 0
      %p135 = por %p133, %p134
      %p136 = scmp.le.s32.totalorder 1, %s13
      %p137 = scmp.lt.s32.totalorder %s13, 3
      %p138 = pnand %p136, %p137
      %p139 = pneg %p138
      // Predicated region
      $region9: #{tpu_custom_call.1} parent=5 // pred_check
        _
      $region10: #{tpu_custom_call.1} parent=5 // pred_check_branch
        %141 = sbr.rel (%p138) target = $region12
      $region11: #{tpu_custom_call.1} parent=5 // pred_region
        %s142 = ssub.s32 %s13, 1
        // Predicated region
        $region13: #{tpu_custom_call.1} parent=11 // pred_check
          %p143 = pneg %p60
        $region14: #{tpu_custom_call.1} parent=11 // pred_check_branch
          %145 = sbr.rel (%p143) target = $region16
        $region15: #{tpu_custom_call.1} parent=11 // pred_region
          _
        $region16: #{tpu_custom_call.1} parent=11 // pred_fallthru
          _
        // Predicated region
        $region17: #{tpu_custom_call.1} parent=11 // pred_check
          %p146 = pneg %p81
        $region18: #{tpu_custom_call.1} parent=11 // pred_check_branch
          %148 = sbr.rel (%p146) target = $region20
        $region19: #{tpu_custom_call.1} parent=11 // pred_region
          _
        $region20: #{tpu_custom_call.1} parent=11 // pred_fallthru
          _
        // Predicated region
        $region21: #{tpu_custom_call.1} parent=11 // pred_check
          %p149 = pneg %p102
        $region22: #{tpu_custom_call.1} parent=11 // pred_check_branch
          %151 = sbr.rel (%p149) target = $region24
        $region23: #{tpu_custom_call.1} parent=11 // pred_region
          _
        $region24: #{tpu_custom_call.1} parent=11 // pred_fallthru
          _
      $region12: #{tpu_custom_call.1} parent=5 // pred_fallthru
        _
      %p152 = scmp.lt.s32.totalorder %s13, 2
      // Predicated region
      $region25: #{tpu_custom_call.1} parent=5 // pred_check
        %p153 = pneg %p152
      $region26: #{tpu_custom_call.1} parent=5 // pred_check_branch
        %155 = sbr.rel (%p153) target = $region28
      $region27: #{tpu_custom_call.1} parent=5 // pred_region
        // Predicated region
        $region29: #{tpu_custom_call.1} parent=27 // pred_check
          %p156 = pneg %p33
        $region30: #{tpu_custom_call.1} parent=27 // pred_check_branch
          %158 = sbr.rel (%p156) target = $region32
        $region31: #{tpu_custom_call.1} parent=27 // pred_region
          %s159 = smul.u32 8, %s13
          %p160 = scmp.lt.s32.totalorder %s159, 15
          %s161 = scalar_select %p160, %s159, 15
          %s162 = smul.addr %s161, 3
          %s163 = smul.addr %s162, 8
          %s164 = scalar_lea.vmem %s0, %s163
          %s165 = smul.u32 8, %s13
        $region32: #{tpu_custom_call.1} parent=27 // pred_fallthru
          _
      $region28: #{tpu_custom_call.1} parent=5 // pred_fallthru
        _
      %p166 = scmp.le.s32.totalorder 1, %s13
      %p167 = scmp.lt.s32.totalorder %s13, 3
      %p168 = pnand %p166, %p167
      %p169 = pneg %p168
      // Predicated region
      $region33: #{tpu_custom_call.1} parent=5 // pred_check
        _
      $region34: #{tpu_custom_call.1} parent=5 // pred_check_branch
        %171 = sbr.rel (%p168) target = $region36
      $region35: #{tpu_custom_call.1} parent=5 // pred_region
        %s172 = ssub.s32 %s13, 1
        %s173 = smul.u32 8, %s18
        %p174 = scmp.lt.s32.totalorder %s173, 15
        %s175 = scalar_select %p174, %s173, 15
        %s176 = smul.addr %s175, 3
        %s177 = smul.addr %s176, 8
        %s178 = scalar_lea.vmem %s0, %s177
        %p179 = pneg %p39
        %p180 = pneg %p36
        %p181 = pneg %p60
        %p182 = pneg %p57
        %p183 = pneg %p81
        %p184 = pneg %p78
        %p185 = pneg %p102
        %p186 = pneg %p99
        %p187 = pneg %p128
        %p188 = pneg %p125
        %s189 = sand.u32 %s115, 1
        %s190 = scalar_lea.sflag [#allocation3], %s189
        %s191 = sand.u32 %s115, 1
        %s192 = smul.addr %s191, 8
        %s193 = scalar_lea.vmem [#allocation2], %s192
        %s194 = smul.u32 8, %s18
        %p195 = scmp.lt.s32.totalorder %s194, 15
        %s196 = scalar_select %p195, %s194, 15
        %s197 = smul.addr %s196, 3
        %s198 = smul.addr %s197, 8
        %s199 = scalar_lea.vmem %s0, %s198
        %s200 = smul.u32 8, %s18
        %v201 = vld [vmem:[%s199] sm:$0xff]
        %v202 = vld [vmem:[%s199 + $0x8] sm:$0xff]
        %v203 = vld [vmem:[%s199 + $0x18] sm:$0xff]
        %v204 = vld [vmem:[%s199 + $0x20] sm:$0xff]
        %v205 = vld [vmem:[%s199 + $0x30] sm:$0xff]
        %v206 = vld [vmem:[%s199 + $0x38] sm:$0xff]
        %v207 = vld [vmem:[%s199 + $0x48] sm:$0xff]
        %v208 = vld [vmem:[%s199 + $0x50] sm:$0xff]
        %v209 = vld [vmem:[%s199 + $0x60] sm:$0xff]
        %v210 = vld [vmem:[%s199 + $0x68] sm:$0xff]
        %v211 = vld [vmem:[%s199 + $0x78] sm:$0xff]
        %v212 = vld [vmem:[%s199 + $0x80] sm:$0xff]
        %v213 = vld [vmem:[%s199 + $0x90] sm:$0xff]
        %v214 = vld [vmem:[%s199 + $0x98] sm:$0xff]
        %v215 = vld [vmem:[%s199 + $0xa8] sm:$0xff]
        %v216 = vld [vmem:[%s199 + $0xb0] sm:$0xff]
        %v217 = vld [vmem:[%s1] sm:$0xff]
        %v218 = vld [vmem:[%s1 + $0x8] sm:$0xff]
        %v219 = vld [vmem:[%s1 + $0x10] sm:$0xff]
        %v220 = vld [vmem:[%s1 + $0x18] sm:$0xff]
        %v221 = vld [vmem:[%s199 + $0x1] sm:$0xff]
        %v222 = vld [vmem:[%s199 + $0x9] sm:$0xff]
        %v223 = vld [vmem:[%s199 + $0x19] sm:$0xff]
        %v224 = vld [vmem:[%s199 + $0x21] sm:$0xff]
        %v225 = vld [vmem:[%s199 + $0x31] sm:$0xff]
        %v226 = vld [vmem:[%s199 + $0x39] sm:$0xff]
        %v227 = vld [vmem:[%s199 + $0x49] sm:$0xff]
        %v228 = vld [vmem:[%s199 + $0x51] sm:$0xff]
        %v229 = vld [vmem:[%s199 + $0x61] sm:$0xff]
        %v230 = vld [vmem:[%s199 + $0x69] sm:$0xff]
        %v231 = vld [vmem:[%s199 + $0x79] sm:$0xff]
        %v232 = vld [vmem:[%s199 + $0x81] sm:$0xff]
        %v233 = vld [vmem:[%s199 + $0x91] sm:$0xff]
        %v234 = vld [vmem:[%s199 + $0x99] sm:$0xff]
        %v235 = vld [vmem:[%s199 + $0xa9] sm:$0xff]
        %v236 = vld [vmem:[%s199 + $0xb1] sm:$0xff]
        %s237 = scalar_lea.vmem %s1, 32
        %v238 = vld [vmem:[%s237] sm:$0xff]
        %v239 = vld [vmem:[%s237 + $0x8] sm:$0xff]
        %v240 = vld [vmem:[%s237 + $0x10] sm:$0xff]
        %v241 = vld [vmem:[%s237 + $0x18] sm:$0xff]
        %vm242 = vcmask 261120
        %v244 = vsel %vm242, %v221, 0
        %v247 = vsel %vm242, %v222, 0
        %v250 = vsel %vm242, %v223, 0
        %v253 = vsel %vm242, %v224, 0
        %v256 = vsel %vm242, %v225, 0
        %v259 = vsel %vm242, %v226, 0
        %v262 = vsel %vm242, %v227, 0
        %v265 = vsel %vm242, %v228, 0
        %v268 = vsel %vm242, %v229, 0
        %v271 = vsel %vm242, %v230, 0
        %v274 = vsel %vm242, %v231, 0
        %v277 = vsel %vm242, %v232, 0
        %v280 = vsel %vm242, %v233, 0
        %v283 = vsel %vm242, %v234, 0
        %v286 = vsel %vm242, %v235, 0
        %v289 = vsel %vm242, %v236, 0
        %291 = vmatprep.subr.mxu0 0.0
        %292 = vmatpush1.msra.mxu0 %v238
        %293 = vmatprep.subr.mxu0 0.0
        %294 = vmatpush1.msra.mxu0 %v239
        %295 = vmatprep.subr.mxu0 0.0
        %296 = vmatpush1.msra.mxu0 %v240
        %297 = vmatprep.subr.mxu0 0.0
        %298 = vmatpush1.msra.mxu0 %v241
        %299 = vmatprep.subr.mxu0 0.0
        %300 = vmatpush1.msra.mxu0 0.0
        %301 = vmatprep.subr.mxu0 0.0
        %302 = vmatpush1.msra.mxu0 0.0
        %303 = vmatprep.subr.mxu0 0.0
        %304 = vmatpush1.msra.mxu0 0.0
        %305 = vmatprep.subr.mxu0 0.0
        %306 = vmatpush1.msra.mxu0 0.0
        %307 = vmatprep.subr.mxu0 0.0
        %308 = vmatpush1.msra.mxu0 0.0
        %309 = vmatprep.subr.mxu0 0.0
        %310 = vmatpush1.msra.mxu0 0.0
        %311 = vmatprep.subr.mxu0 0.0
        %312 = vmatpush1.msra.mxu0 0.0
        %313 = vmatprep.subr.mxu0 0.0
        %314 = vmatpush1.msra.mxu0 0.0
        %315 = vmatprep.subr.mxu0 0.0
        %316 = vmatpush1.msra.mxu0 0.0
        %317 = vmatprep.subr.mxu0 0.0
        %318 = vmatpush1.msra.mxu0 0.0
        %319 = vmatprep.subr.mxu0 0.0
        %320 = vmatpush1.msra.mxu0 0.0
        %321 = vmatprep.subr.mxu0 0.0
        %322 = vmatpush1.msra.mxu0 0.0
        %323 = vmatprep.subr.mxu0 0.0
        %324 = vmatpush1.msra.mxu0 0.0
        %325 = vmatprep.subr.mxu0 0.0
        %326 = vmatpush1.msra.mxu0 0.0
        %327 = vmatprep.subr.mxu0 0.0
        %328 = vmatpush1.msra.mxu0 0.0
        %329 = vmatprep.subr.mxu0 0.0
        %330 = vmatpush1.msra.mxu0 0.0
        %331 = vmatprep.subr.mxu0 0.0
        %332 = vmatpush1.msra.mxu0 0.0
        %333 = vmatprep.subr.mxu0 0.0
        %334 = vmatpush1.msra.mxu0 0.0
        %335 = vmatprep.subr.mxu0 0.0
        %336 = vmatpush1.msra.mxu0 0.0
        %337 = vmatprep.subr.mxu0 0.0
        %338 = vmatpush1.msra.mxu0 0.0
        %339 = vmatprep.subr.mxu0 0.0
        %340 = vmatpush1.msra.mxu0 0.0
        %341 = vmatprep.subr.mxu0 0.0
        %342 = vmatpush1.msra.mxu0 0.0
        %343 = vmatprep.subr.mxu0 0.0
        %344 = vmatpush1.msra.mxu0 0.0
        %345 = vmatprep.subr.mxu0 0.0
        %346 = vmatpush1.msra.mxu0 0.0
        %347 = vmatprep.subr.mxu0 0.0
        %348 = vmatpush1.msra.mxu0 0.0
        %349 = vmatprep.subr.mxu0 0.0
        %350 = vmatpush1.msra.mxu0 0.0
        %351 = vmatprep.subr.mxu0 0.0
        %352 = vmatpush1.msra.mxu0 0.0
        %353 = vmatprep.subr.mxu0 0.0
        %354 = vmatpush1.msra.mxu0 0.0
        %355 = vmatprep.mubr.f32.mxu0 0.0
        %356 = vmatmul.mubr.f32.gmra.mrb[0].mxu0 %v244
        %v357 = vpop.f32.mrb[0].mxu0
        %v358 = vadd.f32 0.0, %v357
        %v359 = vpop.f32.mrb[0].mxu0
        %360 = vmatprep.mubr.f32.mxu0 0.0
        %361 = vmatmul.mubr.f32.gmra.mrb[0].mxu0 %v247
        %v362 = vpop.f32.mrb[0].mxu0
        %v363 = vadd.f32 0.0, %v362
        %v364 = vpop.f32.mrb[0].mxu0
        %365 = vmatprep.mubr.f32.mxu0 0.0
        %366 = vmatmul.mubr.f32.gmra.mrb[0].mxu0 %v250
        %v367 = vpop.f32.mrb[0].mxu0
        %v368 = vadd.f32 0.0, %v367
        %v369 = vpop.f32.mrb[0].mxu0
        %370 = vmatprep.mubr.f32.mxu0 0.0
        %371 = vmatmul.mubr.f32.gmra.mrb[0].mxu0 %v253
        %v372 = vpop.f32.mrb[0].mxu0
        %v373 = vadd.f32 0.0, %v372
        %v374 = vpop.f32.mrb[0].mxu0
        %375 = vmatprep.mubr.f32.mxu0 0.0
        %376 = vmatmul.mubr.f32.gmra.mrb[0].mxu0 %v256
        %v377 = vpop.f32.mrb[0].mxu0
        %v378 = vadd.f32 0.0, %v377
        %v379 = vpop.f32.mrb[0].mxu0
        %380 = vmatprep.mubr.f32.mxu0 0.0
        %381 = vmatmul.mubr.f32.gmra.mrb[0].mxu0 %v259
        %v382 = vpop.f32.mrb[0].mxu0
        %v383 = vadd.f32 0.0, %v382
        %v384 = vpop.f32.mrb[0].mxu0
        %385 = vmatprep.mubr.f32.mxu0 0.0
        %386 = vmatmul.mubr.f32.gmra.mrb[0].mxu0 %v262
        %v387 = vpop.f32.mrb[0].mxu0
        %v388 = vadd.f32 0.0, %v387
        %v389 = vpop.f32.mrb[0].mxu0
        %390 = vmatprep.mubr.f32.mxu0 0.0
        %391 = vmatmul.mubr.f32.gmra.mrb[0].mxu0 %v265
        %v392 = vpop.f32.mrb[0].mxu0
        %v393 = vadd.f32 0.0, %v392
        %v394 = vpop.f32.mrb[0].mxu0
        %395 = vmatprep.mubr.f32.mxu0 0.0
        %396 = vmatmul.mubr.f32.gmra.mrb[0].mxu0 %v268
        %v397 = vpop.f32.mrb[0].mxu0
        %v398 = vadd.f32 0.0, %v397
        %v399 = vpop.f32.mrb[0].mxu0
        %400 = vmatprep.mubr.f32.mxu0 0.0
        %401 = vmatmul.mubr.f32.gmra.mrb[0].mxu0 %v271
        %v402 = vpop.f32.mrb[0].mxu0
        %v403 = vadd.f32 0.0, %v402
        %v404 = vpop.f32.mrb[0].mxu0
        %405 = vmatprep.mubr.f32.mxu0 0.0
        %406 = vmatmul.mubr.f32.gmra.mrb[0].mxu0 %v274
        %v407 = vpop.f32.mrb[0].mxu0
        %v408 = vadd.f32 0.0, %v407
        %v409 = vpop.f32.mrb[0].mxu0
        %410 = vmatprep.mubr.f32.mxu0 0.0
        %411 = vmatmul.mubr.f32.gmra.mrb[0].mxu0 %v277
        %v412 = vpop.f32.mrb[0].mxu0
        %v413 = vadd.f32 0.0, %v412
        %v414 = vpop.f32.mrb[0].mxu0
        %415 = vmatprep.mubr.f32.mxu0 0.0
        %416 = vmatmul.mubr.f32.gmra.mrb[0].mxu0 %v280
        %v417 = vpop.f32.mrb[0].mxu0
        %v418 = vadd.f32 0.0, %v417
        %v419 = vpop.f32.mrb[0].mxu0
        %420 = vmatprep.mubr.f32.mxu0 0.0
        %421 = vmatmul.mubr.f32.gmra.mrb[0].mxu0 %v283
        %v422 = vpop.f32.mrb[0].mxu0
        %v423 = vadd.f32 0.0, %v422
        %v424 = vpop.f32.mrb[0].mxu0
        %425 = vmatprep.mubr.f32.mxu0 0.0
        %426 = vmatmul.mubr.f32.gmra.mrb[0].mxu0 %v286
        %v427 = vpop.f32.mrb[0].mxu0
        %v428 = vadd.f32 0.0, %v427
        %v429 = vpop.f32.mrb[0].mxu0
        %430 = vmatprep.mubr.f32.mxu0 0.0
        %431 = vmatmul.mubr.f32.gmra.mrb[0].mxu0 %v289
        %v432 = vpop.f32.mrb[0].mxu0
        %v433 = vadd.f32 0.0, %v432
        %v434 = vpop.f32.mrb[0].mxu0
        %435 = vdwg.mxu0
        %v437 = vsel %vm242, %v201, 0
        %v440 = vsel %vm242, %v202, 0
        %v443 = vsel %vm242, %v203, 0
        %v446 = vsel %vm242, %v204, 0
        %v449 = vsel %vm242, %v205, 0
        %v452 = vsel %vm242, %v206, 0
        %v455 = vsel %vm242, %v207, 0
        %v458 = vsel %vm242, %v208, 0
        %v461 = vsel %vm242, %v209, 0
        %v464 = vsel %vm242, %v210, 0
        %v467 = vsel %vm242, %v211, 0
        %v470 = vsel %vm242, %v212, 0
        %v473 = vsel %vm242, %v213, 0
        %v476 = vsel %vm242, %v214, 0
        %v479 = vsel %vm242, %v215, 0
        %v482 = vsel %vm242, %v216, 0
        %484 = vmatprep.subr.mxu0 0.0
        %485 = vmatpush1.msra.mxu0 %v217
        %486 = vmatprep.subr.mxu0 0.0
        %487 = vmatpush1.msra.mxu0 %v218
        %488 = vmatprep.subr.mxu0 0.0
        %489 = vmatpush1.msra.mxu0 %v219
        %490 = vmatprep.subr.mxu0 0.0
        %491 = vmatpush1.msra.mxu0 %v220
        %492 = vmatprep.subr.mxu0 0.0
        %493 = vmatpush1.msra.mxu0 0.0
        %494 = vmatprep.subr.mxu0 0.0
        %495 = vmatpush1.msra.mxu0 0.0
        %496 = vmatprep.subr.mxu0 0.0
        %497 = vmatpush1.msra.mxu0 0.0
        %498 = vmatprep.subr.mxu0 0.0
        %499 = vmatpush1.msra.mxu0 0.0
        %500 = vmatprep.subr.mxu0 0.0
        %501 = vmatpush1.msra.mxu0 0.0
        %502 = vmatprep.subr.mxu0 0.0
        %503 = vmatpush1.msra.mxu0 0.0
        %504 = vmatprep.subr.mxu0 0.0
        %505 = vmatpush1.msra.mxu0 0.0
        %506 = vmatprep.subr.mxu0 0.0
        %507 = vmatpush1.msra.mxu0 0.0
        %508 = vmatprep.subr.mxu0 0.0
        %509 = vmatpush1.msra.mxu0 0.0
        %510 = vmatprep.subr.mxu0 0.0
        %511 = vmatpush1.msra.mxu0 0.0
        %512 = vmatprep.subr.mxu0 0.0
        %513 = vmatpush1.msra.mxu0 0.0
        %514 = vmatprep.subr.mxu0 0.0
        %515 = vmatpush1.msra.mxu0 0.0
        %516 = vmatprep.subr.mxu0 0.0
        %517 = vmatpush1.msra.mxu0 0.0
        %518 = vmatprep.subr.mxu0 0.0
        %519 = vmatpush1.msra.mxu0 0.0
        %520 = vmatprep.subr.mxu0 0.0
        %521 = vmatpush1.msra.mxu0 0.0
        %522 = vmatprep.subr.mxu0 0.0
        %523 = vmatpush1.msra.mxu0 0.0
        %524 = vmatprep.subr.mxu0 0.0
        %525 = vmatpush1.msra.mxu0 0.0
        %526 = vmatprep.subr.mxu0 0.0
        %527 = vmatpush1.msra.mxu0 0.0
        %528 = vmatprep.subr.mxu0 0.0
        %529 = vmatpush1.msra.mxu0 0.0
        %530 = vmatprep.subr.mxu0 0.0
        %531 = vmatpush1.msra.mxu0 0.0
        %532 = vmatprep.subr.mxu0 0.0
        %533 = vmatpush1.msra.mxu0 0.0
        %534 = vmatprep.subr.mxu0 0.0
        %535 = vmatpush1.msra.mxu0 0.0
        %536 = vmatprep.subr.mxu0 0.0
        %537 = vmatpush1.msra.mxu0 0.0
        %538 = vmatprep.subr.mxu0 0.0
        %539 = vmatpush1.msra.mxu0 0.0
        %540 = vmatprep.subr.mxu0 0.0
        %541 = vmatpush1.msra.mxu0 0.0
        %542 = vmatprep.subr.mxu0 0.0
        %543 = vmatpush1.msra.mxu0 0.0
        %544 = vmatprep.subr.mxu0 0.0
        %545 = vmatpush1.msra.mxu0 0.0
        %546 = vmatprep.subr.mxu0 0.0
        %547 = vmatpush1.msra.mxu0 0.0
        %548 = vmatprep.mubr.f32.mxu0 0.0
        %549 = vmatmul.mubr.f32.gmra.mrb[0].mxu0 %v437
        %v550 = vpop.f32.mrb[0].mxu0
        %v551 = vadd.f32 %v358, %v550
        %v552 = vpop.f32.mrb[0].mxu0
        %553 = vmatprep.mubr.f32.mxu0 0.0
        %554 = vmatmul.mubr.f32.gmra.mrb[0].mxu0 %v440
        %v555 = vpop.f32.mrb[0].mxu0
        %v556 = vadd.f32 %v363, %v555
        %v557 = vpop.f32.mrb[0].mxu0
        %558 = vmatprep.mubr.f32.mxu0 0.0
        %559 = vmatmul.mubr.f32.gmra.mrb[0].mxu0 %v443
        %v560 = vpop.f32.mrb[0].mxu0
        %v561 = vadd.f32 %v368, %v560
        %v562 = vpop.f32.mrb[0].mxu0
        %563 = vmatprep.mubr.f32.mxu0 0.0
        %564 = vmatmul.mubr.f32.gmra.mrb[0].mxu0 %v446
        %v565 = vpop.f32.mrb[0].mxu0
        %v566 = vadd.f32 %v373, %v565
        %v567 = vpop.f32.mrb[0].mxu0
        %568 = vmatprep.mubr.f32.mxu0 0.0
        %569 = vmatmul.mubr.f32.gmra.mrb[0].mxu0 %v449
        %v570 = vpop.f32.mrb[0].mxu0
        %v571 = vadd.f32 %v378, %v570
        %v572 = vpop.f32.mrb[0].mxu0
        %573 = vmatprep.mubr.f32.mxu0 0.0
        %574 = vmatmul.mubr.f32.gmra.mrb[0].mxu0 %v452
        %v575 = vpop.f32.mrb[0].mxu0
        %v576 = vadd.f32 %v383, %v575
        %v577 = vpop.f32.mrb[0].mxu0
        %578 = vmatprep.mubr.f32.mxu0 0.0
        %579 = vmatmul.mubr.f32.gmra.mrb[0].mxu0 %v455
        %v580 = vpop.f32.mrb[0].mxu0
        %v581 = vadd.f32 %v388, %v580
        %v582 = vpop.f32.mrb[0].mxu0
        %583 = vmatprep.mubr.f32.mxu0 0.0
        %584 = vmatmul.mubr.f32.gmra.mrb[0].mxu0 %v458
        %v585 = vpop.f32.mrb[0].mxu0
        %v586 = vadd.f32 %v393, %v585
        %v587 = vpop.f32.mrb[0].mxu0
        %588 = vmatprep.mubr.f32.mxu0 0.0
        %589 = vmatmul.mubr.f32.gmra.mrb[0].mxu0 %v461
        %v590 = vpop.f32.mrb[0].mxu0
        %v591 = vadd.f32 %v398, %v590
        %v592 = vpop.f32.mrb[0].mxu0
        %593 = vmatprep.mubr.f32.mxu0 0.0
        %594 = vmatmul.mubr.f32.gmra.mrb[0].mxu0 %v464
        %v595 = vpop.f32.mrb[0].mxu0
        %v596 = vadd.f32 %v403, %v595
        %v597 = vpop.f32.mrb[0].mxu0
        %598 = vmatprep.mubr.f32.mxu0 0.0
        %599 = vmatmul.mubr.f32.gmra.mrb[0].mxu0 %v467
        %v600 = vpop.f32.mrb[0].mxu0
        %v601 = vadd.f32 %v408, %v600
        %v602 = vpop.f32.mrb[0].mxu0
        %603 = vmatprep.mubr.f32.mxu0 0.0
        %604 = vmatmul.mubr.f32.gmra.mrb[0].mxu0 %v470
        %v605 = vpop.f32.mrb[0].mxu0
        %v606 = vadd.f32 %v413, %v605
        %v607 = vpop.f32.mrb[0].mxu0
        %608 = vmatprep.mubr.f32.mxu0 0.0
        %609 = vmatmul.mubr.f32.gmra.mrb[0].mxu0 %v473
        %v610 = vpop.f32.mrb[0].mxu0
        %v611 = vadd.f32 %v418, %v610
        %v612 = vpop.f32.mrb[0].mxu0
        %613 = vmatprep.mubr.f32.mxu0 0.0
        %614 = vmatmul.mubr.f32.gmra.mrb[0].mxu0 %v476
        %v615 = vpop.f32.mrb[0].mxu0
        %v616 = vadd.f32 %v423, %v615
        %v617 = vpop.f32.mrb[0].mxu0
        %618 = vmatprep.mubr.f32.mxu0 0.0
        %619 = vmatmul.mubr.f32.gmra.mrb[0].mxu0 %v479
        %v620 = vpop.f32.mrb[0].mxu0
        %v621 = vadd.f32 %v428, %v620
        %v622 = vpop.f32.mrb[0].mxu0
        %623 = vmatprep.mubr.f32.mxu0 0.0
        %624 = vmatmul.mubr.f32.gmra.mrb[0].mxu0 %v482
        %v625 = vpop.f32.mrb[0].mxu0
        %v626 = vadd.f32 %v433, %v625
        %v627 = vpop.f32.mrb[0].mxu0
        %628 = vdwg.mxu0
        %v629 = vld [vmem:[%s199 + $0x2] sm:$0xff]
        %v630 = vld [vmem:[%s199 + $0xa] sm:$0xff]
        %v631 = vld [vmem:[%s199 + $0x1a] sm:$0xff]
        %v632 = vld [vmem:[%s199 + $0x22] sm:$0xff]
        %v633 = vld [vmem:[%s199 + $0x32] sm:$0xff]
        %v634 = vld [vmem:[%s199 + $0x3a] sm:$0xff]
        %v635 = vld [vmem:[%s199 + $0x4a] sm:$0xff]
        %v636 = vld [vmem:[%s199 + $0x52] sm:$0xff]
        %v637 = vld [vmem:[%s199 + $0x62] sm:$0xff]
        %v638 = vld [vmem:[%s199 + $0x6a] sm:$0xff]
        %v639 = vld [vmem:[%s199 + $0x7a] sm:$0xff]
        %v640 = vld [vmem:[%s199 + $0x82] sm:$0xff]
        %v641 = vld [vmem:[%s199 + $0x92] sm:$0xff]
        %v642 = vld [vmem:[%s199 + $0x9a] sm:$0xff]
        %v643 = vld [vmem:[%s199 + $0xaa] sm:$0xff]
        %v644 = vld [vmem:[%s199 + $0xb2] sm:$0xff]
        %s645 = scalar_lea.vmem %s1, 64
        %v646 = vld [vmem:[%s645] sm:$0xff]
        %v647 = vld [vmem:[%s645 + $0x8] sm:$0xff]
        %v648 = vld [vmem:[%s645 + $0x10] sm:$0xff]
        %v649 = vld [vmem:[%s645 + $0x18] sm:$0xff]
        %v651 = vsel %vm242, %v629, 0
        %v654 = vsel %vm242, %v630, 0
        %v657 = vsel %vm242, %v631, 0
        %v660 = vsel %vm242, %v632, 0
        %v663 = vsel %vm242, %v633, 0
        %v666 = vsel %vm242, %v634, 0
        %v669 = vsel %vm242, %v635, 0
        %v672 = vsel %vm242, %v636, 0
        %v675 = vsel %vm242, %v637, 0
        %v678 = vsel %vm242, %v638, 0
        %v681 = vsel %vm242, %v639, 0
        %v684 = vsel %vm242, %v640, 0
        %v687 = vsel %vm242, %v641, 0
        %v690 = vsel %vm242, %v642, 0
        %v693 = vsel %vm242, %v643, 0
        %v696 = vsel %vm242, %v644, 0
        %698 = vmatprep.subr.mxu0 0.0
        %699 = vmatpush1.msra.mxu0 %v646
        %700 = vmatprep.subr.mxu0 0.0
        %701 = vmatpush1.msra.mxu0 %v647
        %702 = vmatprep.subr.mxu0 0.0
        %703 = vmatpush1.msra.mxu0 %v648
        %704 = vmatprep.subr.mxu0 0.0
        %705 = vmatpush1.msra.mxu0 %v649
        %706 = vmatprep.subr.mxu0 0.0
        %707 = vmatpush1.msra.mxu0 0.0
        %708 = vmatprep.subr.mxu0 0.0
        %709 = vmatpush1.msra.mxu0 0.0
        %710 = vmatprep.subr.mxu0 0.0
        %711 = vmatpush1.msra.mxu0 0.0
        %712 = vmatprep.subr.mxu0 0.0
        %713 = vmatpush1.msra.mxu0 0.0
        %714 = vmatprep.subr.mxu0 0.0
        %715 = vmatpush1.msra.mxu0 0.0
        %716 = vmatprep.subr.mxu0 0.0
        %717 = vmatpush1.msra.mxu0 0.0
        %718 = vmatprep.subr.mxu0 0.0
        %719 = vmatpush1.msra.mxu0 0.0
        %720 = vmatprep.subr.mxu0 0.0
        %721 = vmatpush1.msra.mxu0 0.0
        %722 = vmatprep.subr.mxu0 0.0
        %723 = vmatpush1.msra.mxu0 0.0
        %724 = vmatprep.subr.mxu0 0.0
        %725 = vmatpush1.msra.mxu0 0.0
        %726 = vmatprep.subr.mxu0 0.0
        %727 = vmatpush1.msra.mxu0 0.0
        %728 = vmatprep.subr.mxu0 0.0
        %729 = vmatpush1.msra.mxu0 0.0
        %730 = vmatprep.subr.mxu0 0.0
        %731 = vmatpush1.msra.mxu0 0.0
        %732 = vmatprep.subr.mxu0 0.0
        %733 = vmatpush1.msra.mxu0 0.0
        %734 = vmatprep.subr.mxu0 0.0
        %735 = vmatpush1.msra.mxu0 0.0
        %736 = vmatprep.subr.mxu0 0.0
        %737 = vmatpush1.msra.mxu0 0.0
        %738 = vmatprep.subr.mxu0 0.0
        %739 = vmatpush1.msra.mxu0 0.0
        %740 = vmatprep.subr.mxu0 0.0
        %741 = vmatpush1.msra.mxu0 0.0
        %742 = vmatprep.subr.mxu0 0.0
        %743 = vmatpush1.msra.mxu0 0.0
        %744 = vmatprep.subr.mxu0 0.0
        %745 = vmatpush1.msra.mxu0 0.0
        %746 = vmatprep.subr.mxu0 0.0
        %747 = vmatpush1.msra.mxu0 0.0
        %748 = vmatprep.subr.mxu0 0.0
        %749 = vmatpush1.msra.mxu0 0.0
        %750 = vmatprep.subr.mxu0 0.0
        %751 = vmatpush1.msra.mxu0 0.0
        %752 = vmatprep.subr.mxu0 0.0
        %753 = vmatpush1.msra.mxu0 0.0
        %754 = vmatprep.subr.mxu0 0.0
        %755 = vmatpush1.msra.mxu0 0.0
        %756 = vmatprep.subr.mxu0 0.0
        %757 = vmatpush1.msra.mxu0 0.0
        %758 = vmatprep.subr.mxu0 0.0
        %759 = vmatpush1.msra.mxu0 0.0
        %760 = vmatprep.subr.mxu0 0.0
        %761 = vmatpush1.msra.mxu0 0.0
        %762 = vmatprep.mubr.f32.mxu0 0.0
        %763 = vmatmul.mubr.f32.gmra.mrb[0].mxu0 %v651
        %v764 = vpop.f32.mrb[0].mxu0
        %v765 = vadd.f32 0.0, %v764
        %v766 = vpop.f32.mrb[0].mxu0
        %767 = vmatprep.mubr.f32.mxu0 0.0
        %768 = vmatmul.mubr.f32.gmra.mrb[0].mxu0 %v654
        %v769 = vpop.f32.mrb[0].mxu0
        %v770 = vadd.f32 0.0, %v769
        %v771 = vpop.f32.mrb[0].mxu0
        %772 = vmatprep.mubr.f32.mxu0 0.0
        %773 = vmatmul.mubr.f32.gmra.mrb[0].mxu0 %v657
        %v774 = vpop.f32.mrb[0].mxu0
        %v775 = vadd.f32 0.0, %v774
        %v776 = vpop.f32.mrb[0].mxu0
        %777 = vmatprep.mubr.f32.mxu0 0.0
        %778 = vmatmul.mubr.f32.gmra.mrb[0].mxu0 %v660
        %v779 = vpop.f32.mrb[0].mxu0
        %v780 = vadd.f32 0.0, %v779
        %v781 = vpop.f32.mrb[0].mxu0
        %782 = vmatprep.mubr.f32.mxu0 0.0
        %783 = vmatmul.mubr.f32.gmra.mrb[0].mxu0 %v663
        %v784 = vpop.f32.mrb[0].mxu0
        %v785 = vadd.f32 0.0, %v784
        %v786 = vpop.f32.mrb[0].mxu0
        %787 = vmatprep.mubr.f32.mxu0 0.0
        %788 = vmatmul.mubr.f32.gmra.mrb[0].mxu0 %v666
        %v789 = vpop.f32.mrb[0].mxu0
        %v790 = vadd.f32 0.0, %v789
        %v791 = vpop.f32.mrb[0].mxu0
        %792 = vmatprep.mubr.f32.mxu0 0.0
        %793 = vmatmul.mubr.f32.gmra.mrb[0].mxu0 %v669
        %v794 = vpop.f32.mrb[0].mxu0
        %v795 = vadd.f32 0.0, %v794
        %v796 = vpop.f32.mrb[0].mxu0
        %797 = vmatprep.mubr.f32.mxu0 0.0
        %798 = vmatmul.mubr.f32.gmra.mrb[0].mxu0 %v672
        %v799 = vpop.f32.mrb[0].mxu0
        %v800 = vadd.f32 0.0, %v799
        %v801 = vpop.f32.mrb[0].mxu0
        %802 = vmatprep.mubr.f32.mxu0 0.0
        %803 = vmatmul.mubr.f32.gmra.mrb[0].mxu0 %v675
        %v804 = vpop.f32.mrb[0].mxu0
        %v805 = vadd.f32 0.0, %v804
        %v806 = vpop.f32.mrb[0].mxu0
        %807 = vmatprep.mubr.f32.mxu0 0.0
        %808 = vmatmul.mubr.f32.gmra.mrb[0].mxu0 %v678
        %v809 = vpop.f32.mrb[0].mxu0
        %v810 = vadd.f32 0.0, %v809
        %v811 = vpop.f32.mrb[0].mxu0
        %812 = vmatprep.mubr.f32.mxu0 0.0
        %813 = vmatmul.mubr.f32.gmra.mrb[0].mxu0 %v681
        %v814 = vpop.f32.mrb[0].mxu0
        %v815 = vadd.f32 0.0, %v814
        %v816 = vpop.f32.mrb[0].mxu0
        %817 = vmatprep.mubr.f32.mxu0 0.0
        %818 = vmatmul.mubr.f32.gmra.mrb[0].mxu0 %v684
        %v819 = vpop.f32.mrb[0].mxu0
        %v820 = vadd.f32 0.0, %v819
        %v821 = vpop.f32.mrb[0].mxu0
        %822 = vmatprep.mubr.f32.mxu0 0.0
        %823 = vmatmul.mubr.f32.gmra.mrb[0].mxu0 %v687
        %v824 = vpop.f32.mrb[0].mxu0
        %v825 = vadd.f32 0.0, %v824
        %v826 = vpop.f32.mrb[0].mxu0
        %827 = vmatprep.mubr.f32.mxu0 0.0
        %828 = vmatmul.mubr.f32.gmra.mrb[0].mxu0 %v690
        %v829 = vpop.f32.mrb[0].mxu0
        %v830 = vadd.f32 0.0, %v829
        %v831 = vpop.f32.mrb[0].mxu0
        %832 = vmatprep.mubr.f32.mxu0 0.0
        %833 = vmatmul.mubr.f32.gmra.mrb[0].mxu0 %v693
        %v834 = vpop.f32.mrb[0].mxu0
        %v835 = vadd.f32 0.0, %v834
        %v836 = vpop.f32.mrb[0].mxu0
        %837 = vmatprep.mubr.f32.mxu0 0.0
        %838 = vmatmul.mubr.f32.gmra.mrb[0].mxu0 %v696
        %v839 = vpop.f32.mrb[0].mxu0
        %v840 = vadd.f32 0.0, %v839
        %v841 = vpop.f32.mrb[0].mxu0
        %842 = vdwg.mxu0
        %v843 = vadd.f32 %v551, %v765
        %v844 = vadd.f32 %v556, %v770
        %v845 = vadd.f32 %v561, %v775
        %v846 = vadd.f32 %v566, %v780
        %v847 = vadd.f32 %v571, %v785
        %v848 = vadd.f32 %v576, %v790
        %v849 = vadd.f32 %v581, %v795
        %v850 = vadd.f32 %v586, %v800
        %v851 = vadd.f32 %v591, %v805
        %v852 = vadd.f32 %v596, %v810
        %v853 = vadd.f32 %v601, %v815
        %v854 = vadd.f32 %v606, %v820
        %v855 = vadd.f32 %v611, %v825
        %v856 = vadd.f32 %v616, %v830
        %v857 = vadd.f32 %v621, %v835
        %v858 = vadd.f32 %v626, %v840
        %v859 = vld [vmem:[%s199 + $0x3] sm:$0xff]
        %v860 = vld [vmem:[%s199 + $0xb] sm:$0xff]
        %v861 = vld [vmem:[%s199 + $0x1b] sm:$0xff]
        %v862 = vld [vmem:[%s199 + $0x23] sm:$0xff]
        %v863 = vld [vmem:[%s199 + $0x33] sm:$0xff]
        %v864 = vld [vmem:[%s199 + $0x3b] sm:$0xff]
        %v865 = vld [vmem:[%s199 + $0x4b] sm:$0xff]
        %v866 = vld [vmem:[%s199 + $0x53] sm:$0xff]
        %v867 = vld [vmem:[%s199 + $0x63] sm:$0xff]
        %v868 = vld [vmem:[%s199 + $0x6b] sm:$0xff]
        %v869 = vld [vmem:[%s199 + $0x7b] sm:$0xff]
        %v870 = vld [vmem:[%s199 + $0x83] sm:$0xff]
        %v871 = vld [vmem:[%s199 + $0x93] sm:$0xff]
        %v872 = vld [vmem:[%s199 + $0x9b] sm:$0xff]
        %v873 = vld [vmem:[%s199 + $0xab] sm:$0xff]
        %v874 = vld [vmem:[%s199 + $0xb3] sm:$0xff]
        %s875 = scalar_lea.vmem %s1, 96
        %v876 = vld [vmem:[%s875] sm:$0xff]
        %v877 = vld [vmem:[%s875 + $0x8] sm:$0xff]
        %v878 = vld [vmem:[%s875 + $0x10] sm:$0xff]
        %v879 = vld [vmem:[%s875 + $0x18] sm:$0xff]
        %v881 = vsel %vm242, %v859, 0
        %v884 = vsel %vm242, %v860, 0
        %v887 = vsel %vm242, %v861, 0
        %v890 = vsel %vm242, %v862, 0
        %v893 = vsel %vm242, %v863, 0
        %v896 = vsel %vm242, %v864, 0
        %v899 = vsel %vm242, %v865, 0
        %v902 = vsel %vm242, %v866, 0
        %v905 = vsel %vm242, %v867, 0
        %v908 = vsel %vm242, %v868, 0
        %v911 = vsel %vm242, %v869, 0
        %v914 = vsel %vm242, %v870, 0
        %v917 = vsel %vm242, %v871, 0
        %v920 = vsel %vm242, %v872, 0
        %v923 = vsel %vm242, %v873, 0
        %v926 = vsel %vm242, %v874, 0
        %928 = vmatprep.subr.mxu0 0.0
        %929 = vmatpush1.msra.mxu0 %v876
        %930 = vmatprep.subr.mxu0 0.0
        %931 = vmatpush1.msra.mxu0 %v877
        %932 = vmatprep.subr.mxu0 0.0
        %933 = vmatpush1.msra.mxu0 %v878
        %934 = vmatprep.subr.mxu0 0.0
        %935 = vmatpush1.msra.mxu0 %v879
        %936 = vmatprep.subr.mxu0 0.0
        %937 = vmatpush1.msra.mxu0 0.0
        %938 = vmatprep.subr.mxu0 0.0
        %939 = vmatpush1.msra.mxu0 0.0
        %940 = vmatprep.subr.mxu0 0.0
        %941 = vmatpush1.msra.mxu0 0.0
        %942 = vmatprep.subr.mxu0 0.0
        %943 = vmatpush1.msra.mxu0 0.0
        %944 = vmatprep.subr.mxu0 0.0
        %945 = vmatpush1.msra.mxu0 0.0
        %946 = vmatprep.subr.mxu0 0.0
        %947 = vmatpush1.msra.mxu0 0.0
        %948 = vmatprep.subr.mxu0 0.0
        %949 = vmatpush1.msra.mxu0 0.0
        %950 = vmatprep.subr.mxu0 0.0
        %951 = vmatpush1.msra.mxu0 0.0
        %952 = vmatprep.subr.mxu0 0.0
        %953 = vmatpush1.msra.mxu0 0.0
        %954 = vmatprep.subr.mxu0 0.0
        %955 = vmatpush1.msra.mxu0 0.0
        %956 = vmatprep.subr.mxu0 0.0
        %957 = vmatpush1.msra.mxu0 0.0
        %958 = vmatprep.subr.mxu0 0.0
        %959 = vmatpush1.msra.mxu0 0.0
        %960 = vmatprep.subr.mxu0 0.0
        %961 = vmatpush1.msra.mxu0 0.0
        %962 = vmatprep.subr.mxu0 0.0
        %963 = vmatpush1.msra.mxu0 0.0
        %964 = vmatprep.subr.mxu0 0.0
        %965 = vmatpush1.msra.mxu0 0.0
        %966 = vmatprep.subr.mxu0 0.0
        %967 = vmatpush1.msra.mxu0 0.0
        %968 = vmatprep.subr.mxu0 0.0
        %969 = vmatpush1.msra.mxu0 0.0
        %970 = vmatprep.subr.mxu0 0.0
        %971 = vmatpush1.msra.mxu0 0.0
        %972 = vmatprep.subr.mxu0 0.0
        %973 = vmatpush1.msra.mxu0 0.0
        %974 = vmatprep.subr.mxu0 0.0
        %975 = vmatpush1.msra.mxu0 0.0
        %976 = vmatprep.subr.mxu0 0.0
        %977 = vmatpush1.msra.mxu0 0.0
        %978 = vmatprep.subr.mxu0 0.0
        %979 = vmatpush1.msra.mxu0 0.0
        %980 = vmatprep.subr.mxu0 0.0
        %981 = vmatpush1.msra.mxu0 0.0
        %982 = vmatprep.subr.mxu0 0.0
        %983 = vmatpush1.msra.mxu0 0.0
        %984 = vmatprep.subr.mxu0 0.0
        %985 = vmatpush1.msra.mxu0 0.0
        %986 = vmatprep.subr.mxu0 0.0
        %987 = vmatpush1.msra.mxu0 0.0
        %988 = vmatprep.subr.mxu0 0.0
        %989 = vmatpush1.msra.mxu0 0.0
        %990 = vmatprep.subr.mxu0 0.0
        %991 = vmatpush1.msra.mxu0 0.0
        %992 = vmatprep.mubr.f32.mxu0 0.0
        %993 = vmatmul.mubr.f32.gmra.mrb[0].mxu0 %v881
        %v994 = vpop.f32.mrb[0].mxu0
        %v995 = vadd.f32 0.0, %v994
        %v996 = vpop.f32.mrb[0].mxu0
        %997 = vmatprep.mubr.f32.mxu0 0.0
        %998 = vmatmul.mubr.f32.gmra.mrb[0].mxu0 %v884
        %v999 = vpop.f32.mrb[0].mxu0
        %v1000 = vadd.f32 0.0, %v999
        %v1001 = vpop.f32.mrb[0].mxu0
        %1002 = vmatprep.mubr.f32.mxu0 0.0
        %1003 = vmatmul.mubr.f32.gmra.mrb[0].mxu0 %v887
        %v1004 = vpop.f32.mrb[0].mxu0
        %v1005 = vadd.f32 0.0, %v1004
        %v1006 = vpop.f32.mrb[0].mxu0
        %1007 = vmatprep.mubr.f32.mxu0 0.0
        %1008 = vmatmul.mubr.f32.gmra.mrb[0].mxu0 %v890
        %v1009 = vpop.f32.mrb[0].mxu0
        %v1010 = vadd.f32 0.0, %v1009
        %v1011 = vpop.f32.mrb[0].mxu0
        %1012 = vmatprep.mubr.f32.mxu0 0.0
        %1013 = vmatmul.mubr.f32.gmra.mrb[0].mxu0 %v893
        %v1014 = vpop.f32.mrb[0].mxu0
        %v1015 = vadd.f32 0.0, %v1014
        %v1016 = vpop.f32.mrb[0].mxu0
        %1017 = vmatprep.mubr.f32.mxu0 0.0
        %1018 = vmatmul.mubr.f32.gmra.mrb[0].mxu0 %v896
        %v1019 = vpop.f32.mrb[0].mxu0
        %v1020 = vadd.f32 0.0, %v1019
        %v1021 = vpop.f32.mrb[0].mxu0
        %1022 = vmatprep.mubr.f32.mxu0 0.0
        %1023 = vmatmul.mubr.f32.gmra.mrb[0].mxu0 %v899
        %v1024 = vpop.f32.mrb[0].mxu0
        %v1025 = vadd.f32 0.0, %v1024
        %v1026 = vpop.f32.mrb[0].mxu0
        %1027 = vmatprep.mubr.f32.mxu0 0.0
        %1028 = vmatmul.mubr.f32.gmra.mrb[0].mxu0 %v902
        %v1029 = vpop.f32.mrb[0].mxu0
        %v1030 = vadd.f32 0.0, %v1029
        %v1031 = vpop.f32.mrb[0].mxu0
        %1032 = vmatprep.mubr.f32.mxu0 0.0
        %1033 = vmatmul.mubr.f32.gmra.mrb[0].mxu0 %v905
        %v1034 = vpop.f32.mrb[0].mxu0
        %v1035 = vadd.f32 0.0, %v1034
        %v1036 = vpop.f32.mrb[0].mxu0
        %1037 = vmatprep.mubr.f32.mxu0 0.0
        %1038 = vmatmul.mubr.f32.gmra.mrb[0].mxu0 %v908
        %v1039 = vpop.f32.mrb[0].mxu0
        %v1040 = vadd.f32 0.0, %v1039
        %v1041 = vpop.f32.mrb[0].mxu0
        %1042 = vmatprep.mubr.f32.mxu0 0.0
        %1043 = vmatmul.mubr.f32.gmra.mrb[0].mxu0 %v911
        %v1044 = vpop.f32.mrb[0].mxu0
        %v1045 = vadd.f32 0.0, %v1044
        %v1046 = vpop.f32.mrb[0].mxu0
        %1047 = vmatprep.mubr.f32.mxu0 0.0
        %1048 = vmatmul.mubr.f32.gmra.mrb[0].mxu0 %v914
        %v1049 = vpop.f32.mrb[0].mxu0
        %v1050 = vadd.f32 0.0, %v1049
        %v1051 = vpop.f32.mrb[0].mxu0
        %1052 = vmatprep.mubr.f32.mxu0 0.0
        %1053 = vmatmul.mubr.f32.gmra.mrb[0].mxu0 %v917
        %v1054 = vpop.f32.mrb[0].mxu0
        %v1055 = vadd.f32 0.0, %v1054
        %v1056 = vpop.f32.mrb[0].mxu0
        %1057 = vmatprep.mubr.f32.mxu0 0.0
        %1058 = vmatmul.mubr.f32.gmra.mrb[0].mxu0 %v920
        %v1059 = vpop.f32.mrb[0].mxu0
        %v1060 = vadd.f32 0.0, %v1059
        %v1061 = vpop.f32.mrb[0].mxu0
        %1062 = vmatprep.mubr.f32.mxu0 0.0
        %1063 = vmatmul.mubr.f32.gmra.mrb[0].mxu0 %v923
        %v1064 = vpop.f32.mrb[0].mxu0
        %v1065 = vadd.f32 0.0, %v1064
        %v1066 = vpop.f32.mrb[0].mxu0
        %1067 = vmatprep.mubr.f32.mxu0 0.0
        %1068 = vmatmul.mubr.f32.gmra.mrb[0].mxu0 %v926
        %v1069 = vpop.f32.mrb[0].mxu0
        %v1070 = vadd.f32 0.0, %v1069
        %v1071 = vpop.f32.mrb[0].mxu0
        %1072 = vdwg.mxu0
        %v1073 = vadd.f32 %v843, %v995
        %v1074 = vadd.f32 %v844, %v1000
        %v1075 = vadd.f32 %v845, %v1005
        %v1076 = vadd.f32 %v846, %v1010
        %v1077 = vadd.f32 %v847, %v1015
        %v1078 = vadd.f32 %v848, %v1020
        %v1079 = vadd.f32 %v849, %v1025
        %v1080 = vadd.f32 %v850, %v1030
        %v1081 = vadd.f32 %v851, %v1035
        %v1082 = vadd.f32 %v852, %v1040
        %v1083 = vadd.f32 %v853, %v1045
        %v1084 = vadd.f32 %v854, %v1050
        %v1085 = vadd.f32 %v855, %v1055
        %v1086 = vadd.f32 %v856, %v1060
        %v1087 = vadd.f32 %v857, %v1065
        %v1088 = vadd.f32 %v858, %v1070
        %v1089 = vld [vmem:[%s199 + $0x4] sm:$0xff]
        %v1090 = vld [vmem:[%s199 + $0xc] sm:$0xff]
        %v1091 = vld [vmem:[%s199 + $0x1c] sm:$0xff]
        %v1092 = vld [vmem:[%s199 + $0x24] sm:$0xff]
        %v1093 = vld [vmem:[%s199 + $0x34] sm:$0xff]
        %v1094 = vld [vmem:[%s199 + $0x3c] sm:$0xff]
        %v1095 = vld [vmem:[%s199 + $0x4c] sm:$0xff]
        %v1096 = vld [vmem:[%s199 + $0x54] sm:$0xff]
        %v1097 = vld [vmem:[%s199 + $0x64] sm:$0xff]
        %v1098 = vld [vmem:[%s199 + $0x6c] sm:$0xff]
        %v1099 = vld [vmem:[%s199 + $0x7c] sm:$0xff]
        %v1100 = vld [vmem:[%s199 + $0x84] sm:$0xff]
        %v1101 = vld [vmem:[%s199 + $0x94] sm:$0xff]
        %v1102 = vld [vmem:[%s199 + $0x9c] sm:$0xff]
        %v1103 = vld [vmem:[%s199 + $0xac] sm:$0xff]
        %v1104 = vld [vmem:[%s199 + $0xb4] sm:$0xff]
        %s1105 = scalar_lea.vmem %s1, 128
        %v1106 = vld [vmem:[%s1105] sm:$0xff]
        %v1107 = vld [vmem:[%s1105 + $0x8] sm:$0xff]
        %v1108 = vld [vmem:[%s1105 + $0x10] sm:$0xff]
        %v1109 = vld [vmem:[%s1105 + $0x18] sm:$0xff]
        %v1111 = vsel %vm242, %v1089, 0
        %v1114 = vsel %vm242, %v1090, 0
        %v1117 = vsel %vm242, %v1091, 0
        %v1120 = vsel %vm242, %v1092, 0
        %v1123 = vsel %vm242, %v1093, 0
        %v1126 = vsel %vm242, %v1094, 0
        %v1129 = vsel %vm242, %v1095, 0
        %v1132 = vsel %vm242, %v1096, 0
        %v1135 = vsel %vm242, %v1097, 0
        %v1138 = vsel %vm242, %v1098, 0
        %v1141 = vsel %vm242, %v1099, 0
        %v1144 = vsel %vm242, %v1100, 0
        %v1147 = vsel %vm242, %v1101, 0
        %v1150 = vsel %vm242, %v1102, 0
        %v1153 = vsel %vm242, %v1103, 0
        %v1156 = vsel %vm242, %v1104, 0
        %1158 = vmatprep.subr.mxu0 0.0
        %1159 = vmatpush1.msra.mxu0 %v1106
        %1160 = vmatprep.subr.mxu0 0.0
        %1161 = vmatpush1.msra.mxu0 %v1107
        %1162 = vmatprep.subr.mxu0 0.0
        %1163 = vmatpush1.msra.mxu0 %v1108
        %1164 = vmatprep.subr.mxu0 0.0
        %1165 = vmatpush1.msra.mxu0 %v1109
        %1166 = vmatprep.subr.mxu0 0.0
        %1167 = vmatpush1.msra.mxu0 0.0
        %1168 = vmatprep.subr.mxu0 0.0
        %1169 = vmatpush1.msra.mxu0 0.0
        %1170 = vmatprep.subr.mxu0 0.0
        %1171 = vmatpush1.msra.mxu0 0.0
        %1172 = vmatprep.subr.mxu0 0.0
        %1173 = vmatpush1.msra.mxu0 0.0
        %1174 = vmatprep.subr.mxu0 0.0
        %1175 = vmatpush1.msra.mxu0 0.0
        %1176 = vmatprep.subr.mxu0 0.0
        %1177 = vmatpush1.msra.mxu0 0.0
        %1178 = vmatprep.subr.mxu0 0.0
        %1179 = vmatpush1.msra.mxu0 0.0
        %1180 = vmatprep.subr.mxu0 0.0
        %1181 = vmatpush1.msra.mxu0 0.0
        %1182 = vmatprep.subr.mxu0 0.0
        %1183 = vmatpush1.msra.mxu0 0.0
        %1184 = vmatprep.subr.mxu0 0.0
        %1185 = vmatpush1.msra.mxu0 0.0
        %1186 = vmatprep.subr.mxu0 0.0
        %1187 = vmatpush1.msra.mxu0 0.0
        %1188 = vmatprep.subr.mxu0 0.0
        %1189 = vmatpush1.msra.mxu0 0.0
        %1190 = vmatprep.subr.mxu0 0.0
        %1191 = vmatpush1.msra.mxu0 0.0
        %1192 = vmatprep.subr.mxu0 0.0
        %1193 = vmatpush1.msra.mxu0 0.0
        %1194 = vmatprep.subr.mxu0 0.0
        %1195 = vmatpush1.msra.mxu0 0.0
        %1196 = vmatprep.subr.mxu0 0.0
        %1197 = vmatpush1.msra.mxu0 0.0
        %1198 = vmatprep.subr.mxu0 0.0
        %1199 = vmatpush1.msra.mxu0 0.0
        %1200 = vmatprep.subr.mxu0 0.0
        %1201 = vmatpush1.msra.mxu0 0.0
        %1202 = vmatprep.subr.mxu0 0.0
        %1203 = vmatpush1.msra.mxu0 0.0
        %1204 = vmatprep.subr.mxu0 0.0
        %1205 = vmatpush1.msra.mxu0 0.0
        %1206 = vmatprep.subr.mxu0 0.0
        %1207 = vmatpush1.msra.mxu0 0.0
        %1208 = vmatprep.subr.mxu0 0.0
        %1209 = vmatpush1.msra.mxu0 0.0
        %1210 = vmatprep.subr.mxu0 0.0
        %1211 = vmatpush1.msra.mxu0 0.0
        %1212 = vmatprep.subr.mxu0 0.0
        %1213 = vmatpush1.msra.mxu0 0.0
        %1214 = vmatprep.subr.mxu0 0.0
        %1215 = vmatpush1.msra.mxu0 0.0
        %1216 = vmatprep.subr.mxu0 0.0
        %1217 = vmatpush1.msra.mxu0 0.0
        %1218 = vmatprep.subr.mxu0 0.0
        %1219 = vmatpush1.msra.mxu0 0.0
        %1220 = vmatprep.subr.mxu0 0.0
        %1221 = vmatpush1.msra.mxu0 0.0
        %1222 = vmatprep.mubr.f32.mxu0 0.0
        %1223 = vmatmul.mubr.f32.gmra.mrb[0].mxu0 %v1111
        %v1224 = vpop.f32.mrb[0].mxu0
        %v1225 = vadd.f32 0.0, %v1224
        %v1226 = vpop.f32.mrb[0].mxu0
        %1227 = vmatprep.mubr.f32.mxu0 0.0
        %1228 = vmatmul.mubr.f32.gmra.mrb[0].mxu0 %v1114
        %v1229 = vpop.f32.mrb[0].mxu0
        %v1230 = vadd.f32 0.0, %v1229
        %v1231 = vpop.f32.mrb[0].mxu0
        %1232 = vmatprep.mubr.f32.mxu0 0.0
        %1233 = vmatmul.mubr.f32.gmra.mrb[0].mxu0 %v1117
        %v1234 = vpop.f32.mrb[0].mxu0
        %v1235 = vadd.f32 0.0, %v1234
        %v1236 = vpop.f32.mrb[0].mxu0
        %1237 = vmatprep.mubr.f32.mxu0 0.0
        %1238 = vmatmul.mubr.f32.gmra.mrb[0].mxu0 %v1120
        %v1239 = vpop.f32.mrb[0].mxu0
        %v1240 = vadd.f32 0.0, %v1239
        %v1241 = vpop.f32.mrb[0].mxu0
        %1242 = vmatprep.mubr.f32.mxu0 0.0
        %1243 = vmatmul.mubr.f32.gmra.mrb[0].mxu0 %v1123
        %v1244 = vpop.f32.mrb[0].mxu0
        %v1245 = vadd.f32 0.0, %v1244
        %v1246 = vpop.f32.mrb[0].mxu0
        %1247 = vmatprep.mubr.f32.mxu0 0.0
        %1248 = vmatmul.mubr.f32.gmra.mrb[0].mxu0 %v1126
        %v1249 = vpop.f32.mrb[0].mxu0
        %v1250 = vadd.f32 0.0, %v1249
        %v1251 = vpop.f32.mrb[0].mxu0
        %1252 = vmatprep.mubr.f32.mxu0 0.0
        %1253 = vmatmul.mubr.f32.gmra.mrb[0].mxu0 %v1129
        %v1254 = vpop.f32.mrb[0].mxu0
        %v1255 = vadd.f32 0.0, %v1254
        %v1256 = vpop.f32.mrb[0].mxu0
        %1257 = vmatprep.mubr.f32.mxu0 0.0
        %1258 = vmatmul.mubr.f32.gmra.mrb[0].mxu0 %v1132
        %v1259 = vpop.f32.mrb[0].mxu0
        %v1260 = vadd.f32 0.0, %v1259
        %v1261 = vpop.f32.mrb[0].mxu0
        %1262 = vmatprep.mubr.f32.mxu0 0.0
        %1263 = vmatmul.mubr.f32.gmra.mrb[0].mxu0 %v1135
        %v1264 = vpop.f32.mrb[0].mxu0
        %v1265 = vadd.f32 0.0, %v1264
        %v1266 = vpop.f32.mrb[0].mxu0
        %1267 = vmatprep.mubr.f32.mxu0 0.0
        %1268 = vmatmul.mubr.f32.gmra.mrb[0].mxu0 %v1138
        %v1269 = vpop.f32.mrb[0].mxu0
        %v1270 = vadd.f32 0.0, %v1269
        %v1271 = vpop.f32.mrb[0].mxu0
        %1272 = vmatprep.mubr.f32.mxu0 0.0
        %1273 = vmatmul.mubr.f32.gmra.mrb[0].mxu0 %v1141
        %v1274 = vpop.f32.mrb[0].mxu0
        %v1275 = vadd.f32 0.0, %v1274
        %v1276 = vpop.f32.mrb[0].mxu0
        %1277 = vmatprep.mubr.f32.mxu0 0.0
        %1278 = vmatmul.mubr.f32.gmra.mrb[0].mxu0 %v1144
        %v1279 = vpop.f32.mrb[0].mxu0
        %v1280 = vadd.f32 0.0, %v1279
        %v1281 = vpop.f32.mrb[0].mxu0
        %1282 = vmatprep.mubr.f32.mxu0 0.0
        %1283 = vmatmul.mubr.f32.gmra.mrb[0].mxu0 %v1147
        %v1284 = vpop.f32.mrb[0].mxu0
        %v1285 = vadd.f32 0.0, %v1284
        %v1286 = vpop.f32.mrb[0].mxu0
        %1287 = vmatprep.mubr.f32.mxu0 0.0
        %1288 = vmatmul.mubr.f32.gmra.mrb[0].mxu0 %v1150
        %v1289 = vpop.f32.mrb[0].mxu0
        %v1290 = vadd.f32 0.0, %v1289
        %v1291 = vpop.f32.mrb[0].mxu0
        %1292 = vmatprep.mubr.f32.mxu0 0.0
        %1293 = vmatmul.mubr.f32.gmra.mrb[0].mxu0 %v1153
        %v1294 = vpop.f32.mrb[0].mxu0
        %v1295 = vadd.f32 0.0, %v1294
        %v1296 = vpop.f32.mrb[0].mxu0
        %1297 = vmatprep.mubr.f32.mxu0 0.0
        %1298 = vmatmul.mubr.f32.gmra.mrb[0].mxu0 %v1156
        %v1299 = vpop.f32.mrb[0].mxu0
        %v1300 = vadd.f32 0.0, %v1299
        %v1301 = vpop.f32.mrb[0].mxu0
        %1302 = vdwg.mxu0
        %v1303 = vadd.f32 %v1073, %v1225
        %v1304 = vadd.f32 %v1074, %v1230
        %v1305 = vadd.f32 %v1075, %v1235
        %v1306 = vadd.f32 %v1076, %v1240
        %v1307 = vadd.f32 %v1077, %v1245
        %v1308 = vadd.f32 %v1078, %v1250
        %v1309 = vadd.f32 %v1079, %v1255
        %v1310 = vadd.f32 %v1080, %v1260
        %v1311 = vadd.f32 %v1081, %v1265
        %v1312 = vadd.f32 %v1082, %v1270
        %v1313 = vadd.f32 %v1083, %v1275
        %v1314 = vadd.f32 %v1084, %v1280
        %v1315 = vadd.f32 %v1085, %v1285
        %v1316 = vadd.f32 %v1086, %v1290
        %v1317 = vadd.f32 %v1087, %v1295
        %v1318 = vadd.f32 %v1088, %v1300
        %v1319 = vld [vmem:[%s2] sm:$0x1]
        %v1321 = vlaneseq
        %v1322 = vshrl.u32 %v1321, 7
        %v1323 = vsub.s32 0, %v1322
        %v1324 = vrot.slane %v1319, %v1323
        %v1326 = vadd.f32 %v1303, %v1324
        %v1327 = vadd.f32 %v1304, %v1324
        %v1328 = vadd.f32 %v1305, %v1324
        %v1329 = vadd.f32 %v1306, %v1324
        %v1330 = vadd.f32 %v1307, %v1324
        %v1331 = vadd.f32 %v1308, %v1324
        %v1332 = vadd.f32 %v1309, %v1324
        %v1333 = vadd.f32 %v1310, %v1324
        %v1334 = vadd.f32 %v1311, %v1324
        %v1335 = vadd.f32 %v1312, %v1324
        %v1336 = vadd.f32 %v1313, %v1324
        %v1337 = vadd.f32 %v1314, %v1324
        %v1338 = vadd.f32 %v1315, %v1324
        %v1339 = vadd.f32 %v1316, %v1324
        %v1340 = vadd.f32 %v1317, %v1324
        %v1341 = vadd.f32 %v1318, %v1324
        %v1342 = vtanh.pop %v1326
        %v1343 = vtanh.pop %v1327
        %v1344 = vtanh.pop %v1328
        %v1345 = vtanh.pop %v1329
        %v1346 = vtanh.pop %v1330
        %v1347 = vtanh.pop %v1331
        %v1348 = vtanh.pop %v1332
        %v1349 = vtanh.pop %v1333
        %v1350 = vtanh.pop %v1334
        %v1351 = vtanh.pop %v1335
        %v1352 = vtanh.pop %v1336
        %v1353 = vtanh.pop %v1337
        %v1354 = vtanh.pop %v1338
        %v1355 = vtanh.pop %v1339
        %v1356 = vtanh.pop %v1340
        %v1357 = vtanh.pop %v1341
        %v1358 = vld [vmem:[%s3] sm:$0xff]
        %v1359 = vld [vmem:[%s3 + $0x8] sm:$0xff]
        %v1360 = vmul.f32 %v1342, %v1358
        %v1361 = vmul.f32 %v1343, %v1359
        %v1362 = vmul.f32 %v1344, %v1358
        %v1363 = vmul.f32 %v1345, %v1359
        %v1364 = vmul.f32 %v1346, %v1358
        %v1365 = vmul.f32 %v1347, %v1359
        %v1366 = vmul.f32 %v1348, %v1358
        %v1367 = vmul.f32 %v1349, %v1359
        %v1368 = vmul.f32 %v1350, %v1358
        %v1369 = vmul.f32 %v1351, %v1359
        %v1370 = vmul.f32 %v1352, %v1358
        %v1371 = vmul.f32 %v1353, %v1359
        %v1372 = vmul.f32 %v1354, %v1358
        %v1373 = vmul.f32 %v1355, %v1359
        %v1374 = vmul.f32 %v1356, %v1358
        %v1375 = vmul.f32 %v1357, %v1359
        %v1376 = vadd.f32 %v1360, %v1361
        %v1377 = vrot.slane %v1376, 4
        %v1378 = vadd.f32 %v1376, %v1377
        %v1379 = vrot.slane %v1378, 2
        %v1380 = vadd.f32 %v1378, %v1379
        %v1381 = vrot.slane %v1380, 1
        %v1382 = vadd.f32 %v1380, %v1381
        %v1383 = vadd.f32 %v1362, %v1363
        %v1384 = vrot.slane %v1383, 4
        %v1385 = vadd.f32 %v1383, %v1384
        %v1386 = vrot.slane %v1385, 2
        %v1387 = vadd.f32 %v1385, %v1386
        %v1388 = vrot.slane %v1387, 1
        %v1389 = vadd.f32 %v1387, %v1388
        %v1390 = vadd.f32 %v1364, %v1365
        %v1391 = vrot.slane %v1390, 4
        %v1392 = vadd.f32 %v1390, %v1391
        %v1393 = vrot.slane %v1392, 2
        %v1394 = vadd.f32 %v1392, %v1393
        %v1395 = vrot.slane %v1394, 1
        %v1396 = vadd.f32 %v1394, %v1395
        %v1397 = vadd.f32 %v1366, %v1367
        %v1398 = vrot.slane %v1397, 4
        %v1399 = vadd.f32 %v1397, %v1398
        %v1400 = vrot.slane %v1399, 2
        %v1401 = vadd.f32 %v1399, %v1400
        %v1402 = vrot.slane %v1401, 1
        %v1403 = vadd.f32 %v1401, %v1402
        %v1404 = vadd.f32 %v1368, %v1369
        %v1405 = vrot.slane %v1404, 4
        %v1406 = vadd.f32 %v1404, %v1405
        %v1407 = vrot.slane %v1406, 2
        %v1408 = vadd.f32 %v1406, %v1407
        %v1409 = vrot.slane %v1408, 1
        %v1410 = vadd.f32 %v1408, %v1409
        %v1411 = vadd.f32 %v1370, %v1371
        %v1412 = vrot.slane %v1411, 4
        %v1413 = vadd.f32 %v1411, %v1412
        %v1414 = vrot.slane %v1413, 2
        %v1415 = vadd.f32 %v1413, %v1414
        %v1416 = vrot.slane %v1415, 1
        %v1417 = vadd.f32 %v1415, %v1416
        %v1418 = vadd.f32 %v1372, %v1373
        %v1419 = vrot.slane %v1418, 4
        %v1420 = vadd.f32 %v1418, %v1419
        %v1421 = vrot.slane %v1420, 2
        %v1422 = vadd.f32 %v1420, %v1421
        %v1423 = vrot.slane %v1422, 1
        %v1424 = vadd.f32 %v1422, %v1423
        %v1425 = vadd.f32 %v1374, %v1375
        %v1426 = vrot.slane %v1425, 4
        %v1427 = vadd.f32 %v1425, %v1426
        %v1428 = vrot.slane %v1427, 2
        %v1429 = vadd.f32 %v1427, %v1428
        %v1430 = vrot.slane %v1429, 1
        %v1431 = vadd.f32 %v1429, %v1430
        %v1432 = vtanh.pop %v1382
        %v1433 = vtanh.pop %v1389
        %v1434 = vtanh.pop %v1396
        %v1435 = vtanh.pop %v1403
        %v1436 = vtanh.pop %v1410
        %v1437 = vtanh.pop %v1417
        %v1438 = vtanh.pop %v1424
        %v1439 = vtanh.pop %v1431
        %vm1448 = vcmask 1041409
        %v1449 = vsel %vm1448, %v1433, %v1432
        %vm1450 = vcmask 1042434
        %v1451 = vsel %vm1450, %v1434, %v1449
        %vm1452 = vcmask 1043459
        %v1453 = vsel %vm1452, %v1435, %v1451
        %vm1454 = vcmask 1044484
        %v1455 = vsel %vm1454, %v1436, %v1453
        %vm1456 = vcmask 1045509
        %v1457 = vsel %vm1456, %v1437, %v1455
        %vm1458 = vcmask 1046534
        %v1459 = vsel %vm1458, %v1438, %v1457
        %vm1460 = vcmask 1047559
        %v1461 = vsel %vm1460, %v1439, %v1459
        %1463 = vst [vmem:[%s193] sm:$0xff] %v1461
        %s1464 = sand.u32 %s115, 1
        %s1465 = scalar_lea.sflag [#allocation3], %s1464
        %s1466 = sand.u32 %s115, 1
        %s1467 = smul.addr %s1466, 8
        %s1468 = scalar_lea.vmem [#allocation2], %s1467
        // Predicated region
        $region37: #{tpu_custom_call.1} parent=35 // pred_check
          %p1469 = pneg %p125
        $region38: #{tpu_custom_call.1} parent=35 // pred_check_branch
          %1471 = sbr.rel (%p1469) target = $region40
        $region39: #{tpu_custom_call.1} parent=35 // pred_region
          %s1473 = ssub.s32 128, 128
          %1474 = vsyncadd %s1465, %s1473
          %s1475 = smul.addr %s18, 128
          %s1476 = scalar_lea.hbm %s4, %s1475
          %s1478 = sshll.u32 %s1468, 4
          %s1479 = int_to_ptr.vmem [resolvable:$true] %s1478
          %1481 = dma.vmem_to_hbm [thread:$0]  %s1479, 128, %s1476, %s1465
        $region40: #{tpu_custom_call.1} parent=35 // pred_fallthru
          _
      $region36: #{tpu_custom_call.1} parent=5 // pred_fallthru
        _
      %p1482 = scmp.le.s32.totalorder 2, %s13
      // Predicated region
      $region41: #{tpu_custom_call.1} parent=5 // pred_check
        %p1483 = pneg %p1482
      $region42: #{tpu_custom_call.1} parent=5 // pred_check_branch
        %1485 = sbr.rel (%p1483) target = $region44
      $region43: #{tpu_custom_call.1} parent=5 // pred_region
        %s1486 = ssub.s32 %s13, 2
        // Predicated region
        $region45: #{tpu_custom_call.1} parent=43 // pred_check
          %p1487 = pneg %p131
        $region46: #{tpu_custom_call.1} parent=43 // pred_check_branch
          %1489 = sbr.rel (%p1487) target = $region48
        $region47: #{tpu_custom_call.1} parent=43 // pred_region
          %s1490 = sand.u32 %s116, 1
          %s1491 = scalar_lea.sflag [#allocation3], %s1490
          %s1492 = sand.u32 %s116, 1
          %s1493 = smul.addr %s1492, 8
          %s1494 = scalar_lea.vmem [#allocation2], %s1493
          %1495 = dma.done %s1491, 128
        $region48: #{tpu_custom_call.1} parent=43 // pred_fallthru
          _
      $region44: #{tpu_custom_call.1} parent=5 // pred_fallthru
        _
    $region6: #{tpu_custom_call.1} parent=1 // loop_footer
      %s17 = sadd.s32 1, %s13
    $region7: #{tpu_custom_call.1} parent=1 // loop_footer_branch
      %12 = sbr.rel target = $region3
    $region8: #{tpu_custom_call.1} parent=1 // loop_exit
      _
    %1496 = vsyncpa [#allocation3], 1
    %s1497 = scalar_lea.sflag [#allocation3], 1
    %1498 = vsyncpa %s1497, 1

</llo_original>
